<compile_context>
chip_gen: v5e
topology: v5e:2x2
jax: 0.10.0
libtpu: 0.0.40
codegen_flags: <defaults>
</compile_context>

<pallas_src>
import functools
import math

import jax
import jax.numpy as jnp
from jax import lax
from jax.experimental import pallas as pl
from jax.experimental.pallas import tpu as pltpu


# ---------------------------------------------------------------------------
# In-kernel math helpers
# ---------------------------------------------------------------------------
def _erf(x):
    # Abramowitz & Stegun 7.1.26 (|err| < 1.5e-7).  The divide goes through
    # pl.reciprocal(approx=True) so it lands on the EUP slot, not the VALU.
    a1, a2, a3, a4, a5 = 0.254829592, -0.284496736, 1.421413741, -1.453152027, 1.061405429
    p = 0.3275911
    sgn = jnp.where(x >= 0.0, 1.0, -1.0)
    ax = jnp.abs(x)
    t = pl.reciprocal(1.0 + p * ax, approx=True)
    poly = ((((a5 * t + a4) * t + a3) * t + a2) * t + a1) * t
    return sgn * (1.0 - poly * jnp.exp(-ax * ax))


def _gelu_exact(x):
    # nn.GELU() default = exact (erf) variant.
    return 0.5 * x * (1.0 + _erf(x * (1.0 / math.sqrt(2.0))))


def _layernorm(x, gamma, beta, eps=1e-5):
    mean = jnp.mean(x, axis=-1, keepdims=True)
    var = jnp.mean((x - mean) ** 2, axis=-1, keepdims=True)
    return (x - mean) * lax.rsqrt(var + eps) * gamma + beta


# ---------------------------------------------------------------------------
# Pallas kernel: grid = (batch, query_tile)
#   qi == 0 : LN1 + fused QKV over the FULL sequence -> Q (pre-scaled), K^T, V
#             VMEM scratch (resident for the rest of this batch element).
#   every qi: per-head attention written into a (tq, E) VMEM ctx scratch, one
#             fused output projection, then the M-tiled MLP, then the output tile.
# ---------------------------------------------------------------------------
def _transformer_block_kernel(
    x_ref,                                # (S, E)   rows of x for this batch element
    ln1_g_ref, ln1_b_ref,                 # (1, E)
    wqkv_ref, bqkv_ref,                   # (E, 3E), (1, 3E)
    wo_ref, bo_ref,                       # (E, E), (1, E)
    ln2_g_ref, ln2_b_ref,                 # (1, E)
    w1_ref, b1_ref,                       # (n_mc, E, TM), (n_mc, 1, TM)
    w2_ref, b2_ref,                       # (n_mc, TM, E), (1, E)
    o_ref,                                # (tq, E)
    q_s_ref, kT_s_ref, v_s_ref,           # (S, E), (E, S), (S, E)  compute dtype
    row_s_ref,                            # (tq, E) compute dtype (ctx, then LN2 out)
    acc_ref,                              # (tq, E) f32 MLP accumulator
    *, num_heads,
):
    tq, E = o_ref.shape
    H = num_heads
    Dh = E // H
    scale = 1.0 / math.sqrt(Dh)
    w_dtype = wqkv_ref.dtype              # MXU operand dtype (f32 or bf16)
    qi = pl.program_id(1)

    # ---- per-batch prologue: LN1 + fused QKV over the FULL sequence --------
    @pl.when(qi == 0)
    def _():
        xf = x_ref[...].astype(jnp.float32)                            # (S, E)
        xn = _layernorm(xf, ln1_g_ref[...], ln1_b_ref[...])
        qkv = jnp.dot(xn.astype(w_dtype), wqkv_ref[...],
                      preferred_element_type=jnp.float32) + bqkv_ref[...]
        q_s_ref[...] = (qkv[:, :E] * scale).astype(q_s_ref.dtype)      # scale folded in
        kT_s_ref[...] = qkv[:, E:2 * E].T.astype(kT_s_ref.dtype)       # one transpose/batch
        v_s_ref[...] = qkv[:, 2 * E:].astype(v_s_ref.dtype)

    # ---- attention for this query tile (K^T / V resident in scratch) -------
    row0 = qi * tq
    if tq % 8 == 0:
        row0 = pl.multiple_of(row0, 8)

    for h in range(H):                    # small static loop; nothing carried:
        sl = slice(h * Dh, (h + 1) * Dh)  # each head writes straight to VMEM scratch
        qh = q_s_ref[pl.ds(row0, tq), sl]                               # (tq, Dh)
        s = jnp.dot(qh, kT_s_ref[sl, :],
                    preferred_element_type=jnp.float32)                 # (tq, S)
        s = s - jnp.max(s, axis=-1, keepdims=True)
        e = jnp.exp(s)
        p = e * pl.reciprocal(jnp.sum(e, axis=-1, keepdims=True), approx=True)
        ctx = jnp.dot(p.astype(v_s_ref.dtype), v_s_ref[:, sl],
                      preferred_element_type=jnp.float32)               # (tq, Dh)
        row_s_ref[:, sl] = ctx.astype(row_s_ref.dtype)

    # Single fused output projection (contraction depth = E) + residual 1.
    x_rows = x_ref[pl.ds(row0, tq), :].astype(jnp.float32)
    y = (jnp.dot(row_s_ref[...], wo_ref[...], preferred_element_type=jnp.float32)
         + bo_ref[...] + x_rows)

    # ---- MLP block, M-tiled, accumulating into VMEM ------------------------
    yn = _layernorm(y, ln2_g_ref[...], ln2_b_ref[...])
    row_s_ref[...] = yn.astype(row_s_ref.dtype)    # reuse staging buffer as MXU input
    acc_ref[...] = y + b2_ref[...]                 # residual 2 + final bias

    def mlp_chunk(mi, carry):
        h1 = jnp.dot(row_s_ref[...], w1_ref[mi],
                     preferred_element_type=jnp.float32) + b1_ref[mi]   # (tq, TM)
        h1 = _gelu_exact(h1)
        acc_ref[...] += jnp.dot(h1.astype(w_dtype), w2_ref[mi],
                                preferred_element_type=jnp.float32)
        return carry

    n_mc = w1_ref.shape[0]
    if n_mc == 1:
        mlp_chunk(0, 0)
    else:
        lax.fori_loop(0, n_mc, mlp_chunk, 0, unroll=True)

    o_ref[...] = acc_ref[...].astype(o_ref.dtype)


# ---------------------------------------------------------------------------
# Wrapper
# ---------------------------------------------------------------------------
def _choose_q_tile(S):
    if S <= 256:
        return S
    for cand in (256, 128, 64, 32, 16, 8):
        if S % cand == 0:
            return cand
    return S


def _choose_m_tile(M):
    if M <= 512:
        return M
    for cand in (512, 384, 256, 128):
        if M % cand == 0:
            return cand
    return M


def _default_vmem_limit_bytes():
    # v5e/v6e have 128 MiB of physical VMEM per TensorCore, v7x only 64 MiB.
    # Request ~80% of capacity, capped at 100 MiB, so the compiler keeps headroom.
    try:
        cap = int(pltpu.get_tpu_info().vmem_capacity_bytes)
    except Exception:
        cap = 128 * 1024 * 1024
    return max(32 * 1024 * 1024, min(100 * 1024 * 1024, int(cap * 0.8)))


def transformer_block(x, params, num_heads, *, q_tile=None, m_tile=None,
                      compute_dtype=jnp.float32):
    B, S, E = x.shape
    M = params["w1_t"].shape[-1]
    assert E % num_heads == 0

    tq = q_tile if q_tile is not None else _choose_q_tile(S)
    assert S % tq == 0, "sequence length must be divisible by the query tile"
    assert tq == S or tq % 8 == 0, "query tile must be a multiple of 8"
    nq = S // tq

    tm = m_tile if m_tile is not None else _choose_m_tile(M)
    assert M % tm == 0, "mlp size must be divisible by the M tile"
    n_mc = M // tm

    cd = compute_dtype

    # MXU-operand weights in compute_dtype; MLP weights pre-chunked along M so the
    # kernel walks them with a dynamic *leading* index (no dynamic lane slicing).
    w1c = params["w1_t"].reshape(E, n_mc, tm).transpose(1, 0, 2).astype(cd)  # (n_mc,E,tm)
    b1c = params["b1"].reshape(n_mc, 1, tm)                                   # (n_mc,1,tm)
    w2c = params["w2_t"].reshape(n_mc, tm, E).astype(cd)                      # (n_mc,tm,E)

    weights = [
        params["ln1_g"], params["ln1_b"],
        params["wqkv_t"].astype(cd), params["bqkv"],
        params["wo_t"].astype(cd), params["bo"],
        params["ln2_g"], params["ln2_b"],
        w1c, b1c, w2c, params["b2"],
    ]

    def full_spec(a):
        r = a.ndim
        return pl.BlockSpec(a.shape, lambda b, qi, _r=r: (0,) * _r)

    # x enters once (full sequence resident per batch element); residual rows are
    # sliced from it in-kernel -> no duplicate query-tile input stream.
    in_specs = [pl.BlockSpec((None, S, E), lambda b, qi: (b, 0, 0))]
    in_specs += [full_spec(w) for w in weights]

    flops = int(B * (2 * S * E * (3 * E)      # fused QKV
                     + 4 * S * S * E          # scores + ctx over all heads
                     + 2 * S * E * E          # fused output projection
                     + 4 * S * E * M))        # MLP
    transcendentals = int(B * S * (num_heads * S + M))
    bytes_accessed = int(2 * x.nbytes + sum(int(w.nbytes) for w in weights))

    kernel = functools.partial(_transformer_block_kernel, num_heads=num_heads)

    return pl.pallas_call(
        kernel,
        out_shape=jax.ShapeDtypeStruct((B, S, E), x.dtype),
        grid=(B, nq),
        in_specs=in_specs,
        out_specs=pl.BlockSpec((None, tq, E), lambda b, qi: (b, qi, 0)),
        scratch_shapes=[
            pltpu.VMEM((S, E), cd),             # Q (pre-scaled by 1/sqrt(Dh))
            pltpu.VMEM((E, S), cd),             # K^T (pre-transposed)
            pltpu.VMEM((S, E), cd),             # V
            pltpu.VMEM((tq, E), cd),            # ctx heads -> LN2-output staging
            pltpu.VMEM((tq, E), jnp.float32),   # MLP accumulator (residual + bias)
        ],
        compiler_params=pltpu.CompilerParams(
            dimension_semantics=("parallel", "arbitrary"),
            vmem_limit_bytes=_default_vmem_limit_bytes()),
        cost_estimate=pl.CostEstimate(flops=flops,
                                      transcendentals=transcendentals,
                                      bytes_accessed=bytes_accessed),
    )(x, *weights)


# ---------------------------------------------------------------------------
# Pure-JAX reference (for correctness checking)
# ---------------------------------------------------------------------------
def transformer_block_ref(x, params, num_heads):
    xf = x.astype(jnp.float32)
    B, S, E = x.shape
    H = num_heads
    Dh = E // H

    def ln(v, g, b, eps=1e-5):
        m = v.mean(-1, keepdims=True)
        var = ((v - m) ** 2).mean(-1, keepdims=True)
        return (v - m) / jnp.sqrt(var + eps) * g + b

    xn = ln(xf, params["ln1_g"], params["ln1_b"])
    qkv = xn @ params["wqkv_t"] + params["bqkv"]
    q, k, v = qkv[..., :E], qkv[..., E:2 * E], qkv[..., 2 * E:]
    q = q.reshape(B, S, H, Dh).transpose(0, 2, 1, 3)
    k = k.reshape(B, S, H, Dh).transpose(0, 2, 1, 3)
    v = v.reshape(B, S, H, Dh).transpose(0, 2, 1, 3)
    s = jnp.einsum("bhqd,bhkd->bhqk", q, k) / math.sqrt(Dh)
    p = jax.nn.softmax(s, axis=-1)
    ctx = jnp.einsum("bhqk,bhkd->bhqd", p, v).transpose(0, 2, 1, 3).reshape(B, S, E)
    y = ctx @ params["wo_t"] + params["bo"] + xf
    yn = ln(y, params["ln2_g"], params["ln2_b"])
    h = yn @ params["w1_t"] + params["b1"]
    h = 0.5 * h * (1.0 + jax.lax.erf(h / math.sqrt(2.0)))
    out = h @ params["w2_t"] + params["b2"] + y
    return out.astype(x.dtype)


# ---------------------------------------------------------------------------
# Deterministic parameter init (shapes follow the nn.Module __init__)
# ---------------------------------------------------------------------------
def init_params(key, embedding_dims, mlp_size):
    E, M = embedding_dims, mlp_size
    ks = jax.random.split(key, 8)
    std = 0.02

    in_proj_w = jax.random.normal(ks[0], (3 * E, E), jnp.float32) * std   # packed q|k|v
    in_proj_b = jax.random.normal(ks[1], (3 * E,), jnp.float32) * std
    out_proj_w = jax.random.normal(ks[2], (E, E), jnp.float32) * std
    out_proj_b = jax.random.normal(ks[3], (E,), jnp.float32) * std
    w1 = jax.random.normal(ks[4], (M, E), jnp.float32) * std
    b1 = jax.random.normal(ks[5], (M,), jnp.float32) * std
    w2 = jax.random.normal(ks[6], (E, M), jnp.float32) * std
    b2 = jax.random.normal(ks[7], (E,), jnp.float32) * std

    return {
        # LayerNorms: gamma=1, beta=0 (PyTorch default init)
        "ln1_g": jnp.ones((1, E), jnp.float32), "ln1_b": jnp.zeros((1, E), jnp.float32),
        "ln2_g": jnp.ones((1, E), jnp.float32), "ln2_b": jnp.zeros((1, E), jnp.float32),
        # y = x @ W.T + b  ->  pass transposed (packed) weights to the kernel
        "wqkv_t": in_proj_w.T,                      # (E, 3E), columns = [q | k | v]
        "bqkv": in_proj_b.reshape(1, 3 * E),
        "wo_t": out_proj_w.T, "bo": out_proj_b.reshape(1, E),
        "w1_t": w1.T, "b1": b1.reshape(1, M),
        "w2_t": w2.T, "b2": b2.reshape(1, E),
    }


if __name__ == "__main__":
    # Small shapes consistent with the module (E divisible by num_heads=3).
    B, S, E, M, H = 2, 8, 48, 64, 3

    key = jax.random.PRNGKey(0)
    kx, kx2, kp = jax.random.split(key, 3)
    x = jax.random.normal(kx, (B, S, E), jnp.float32)
    params = init_params(kp, E, M)

    # f32 path, single query tile, single MLP chunk.
    out = jax.block_until_ready(transformer_block(x, params, num_heads=H))
    ref = transformer_block_ref(x, params, num_heads=H)
    assert out.shape == (B, S, E) and out.dtype == jnp.float32
    assert bool(jnp.all(jnp.isfinite(out)))
    assert bool(jnp.allclose(out, ref, rtol=1e-2, atol=1e-2))

    # Multi query-tile + M-tiled MLP loop path (grid=(B,2), 2 MLP chunks),
    # exercising K^T/V scratch reuse and the fori_loop over weight chunks.
    S2 = 16
    x2 = jax.random.normal(kx2, (B, S2, E), jnp.float32)
    out2 = jax.block_until_ready(
        transformer_block(x2, params, num_heads=H, q_tile=8, m_tile=32))
    ref2 = transformer_block_ref(x2, params, num_heads=H)
    assert bool(jnp.allclose(out2, ref2, rtol=1e-2, atol=1e-2))

    # bf16 MXU-operand path (f32 accumulation), as recommended for v6e/v7x.
    out3 = jax.block_until_ready(
        transformer_block(x, params, num_heads=H, compute_dtype=jnp.bfloat16))
    assert bool(jnp.all(jnp.isfinite(out3)))
    assert bool(jnp.allclose(out3, ref, rtol=5e-2, atol=5e-2))

    print("KERNEL_OK")
</pallas_src>

<mosaic_0001>
module attributes {stable_mosaic.version = 11 : i64} {
  func.func @_transformer_block_kernel(%arg0: i32, %arg1: i32, %arg2: memref<1x8x48xf32, #tpu.memory_space<vmem>>, %arg3: memref<1x48xf32, #tpu.memory_space<vmem>>, %arg4: memref<1x48xf32, #tpu.memory_space<vmem>>, %arg5: memref<48x144xf32, #tpu.memory_space<vmem>>, %arg6: memref<1x144xf32, #tpu.memory_space<vmem>>, %arg7: memref<48x48xf32, #tpu.memory_space<vmem>>, %arg8: memref<1x48xf32, #tpu.memory_space<vmem>>, %arg9: memref<1x48xf32, #tpu.memory_space<vmem>>, %arg10: memref<1x48xf32, #tpu.memory_space<vmem>>, %arg11: memref<1x48x64xf32, #tpu.memory_space<vmem>>, %arg12: memref<1x1x64xf32, #tpu.memory_space<vmem>>, %arg13: memref<1x64x48xf32, #tpu.memory_space<vmem>>, %arg14: memref<1x48xf32, #tpu.memory_space<vmem>>, %arg15: memref<1x8x48xf32, #tpu.memory_space<vmem>>, %arg16: memref<8x48xf32, #tpu.memory_space<vmem>>, %arg17: memref<48x8xf32, #tpu.memory_space<vmem>>, %arg18: memref<8x48xf32, #tpu.memory_space<vmem>>, %arg19: memref<8x48xf32, #tpu.memory_space<vmem>>, %arg20: memref<8x48xf32, #tpu.memory_space<vmem>>) attributes {dimension_semantics = [#tpu.dimension_semantics<parallel>, #tpu.dimension_semantics<arbitrary>], iteration_bounds = array<i64: 2, 1>, scalar_prefetch = 0 : i64, scratch_operands = 5 : i64, tpu.core_type = #tpu.core_type<tc>, window_params = [{transform_indices = @transform_0, window_bounds = array<i64: 1, 8, 48>}, {pipeline_mode = #tpu.pipeline_mode<synchronous>, transform_indices = @transform_1, window_bounds = array<i64: 1, 48>}, {pipeline_mode = #tpu.pipeline_mode<synchronous>, transform_indices = @transform_2, window_bounds = array<i64: 1, 48>}, {pipeline_mode = #tpu.pipeline_mode<synchronous>, transform_indices = @transform_3, window_bounds = array<i64: 48, 144>}, {pipeline_mode = #tpu.pipeline_mode<synchronous>, transform_indices = @transform_4, window_bounds = array<i64: 1, 144>}, {pipeline_mode = #tpu.pipeline_mode<synchronous>, transform_indices = @transform_5, window_bounds = array<i64: 48, 48>}, {pipeline_mode = #tpu.pipeline_mode<synchronous>, transform_indices = @transform_6, window_bounds = array<i64: 1, 48>}, {pipeline_mode = #tpu.pipeline_mode<synchronous>, transform_indices = @transform_7, window_bounds = array<i64: 1, 48>}, {pipeline_mode = #tpu.pipeline_mode<synchronous>, transform_indices = @transform_8, window_bounds = array<i64: 1, 48>}, {pipeline_mode = #tpu.pipeline_mode<synchronous>, transform_indices = @transform_9, window_bounds = array<i64: 1, 48, 64>}, {pipeline_mode = #tpu.pipeline_mode<synchronous>, transform_indices = @transform_10, window_bounds = array<i64: 1, 1, 64>}, {pipeline_mode = #tpu.pipeline_mode<synchronous>, transform_indices = @transform_11, window_bounds = array<i64: 1, 64, 48>}, {pipeline_mode = #tpu.pipeline_mode<synchronous>, transform_indices = @transform_12, window_bounds = array<i64: 1, 48>}, {transform_indices = @transform_13, window_bounds = array<i64: 1, 8, 48>}]} {
    %c0_i32 = arith.constant 0 : i32
    %0 = arith.cmpi eq, %arg1, %c0_i32 : i32
    %1 = arith.extui %0 : i1 to i32
    %c0_i32_0 = arith.constant 0 : i32
    %2 = arith.cmpi ne, %1, %c0_i32_0 : i32
    scf.if %2 {
      %c0_91 = arith.constant 0 : index
      %c0_92 = arith.constant 0 : index
      %c0_93 = arith.constant 0 : index
      %153 = vector.load %arg2[%c0_91, %c0_92, %c0_93] : memref<1x8x48xf32, #tpu.memory_space<vmem>>, vector<1x8x48xf32>
      %154 = vector.shape_cast %153 : vector<1x8x48xf32> to vector<8x48xf32>
      %c0_94 = arith.constant 0 : index
      %c0_95 = arith.constant 0 : index
      %155 = vector.load %arg3[%c0_94, %c0_95] : memref<1x48xf32, #tpu.memory_space<vmem>>, vector<1x48xf32>
      %c0_96 = arith.constant 0 : index
      %c0_97 = arith.constant 0 : index
      %156 = vector.load %arg4[%c0_96, %c0_97] : memref<1x48xf32, #tpu.memory_space<vmem>>, vector<1x48xf32>
      %cst_98 = arith.constant dense<0.000000e+00> : vector<8xf32>
      %157 = vector.multi_reduction <add>, %154, %cst_98 [1] : vector<8x48xf32> to vector<8xf32>
      %158 = vector.shape_cast %157 : vector<8xf32> to vector<8x1xf32>
      %cst_99 = arith.constant 4.800000e+01 : f32
      %159 = vector.broadcast %cst_99 : f32 to vector<8x1xf32>
      %160 = arith.divf %158, %159 : vector<8x1xf32>
      %161 = vector.broadcast %160 : vector<8x1xf32> to vector<8x48xf32>
      %162 = arith.subf %154, %161 : vector<8x48xf32>
      %163 = arith.mulf %162, %162 : vector<8x48xf32>
      %cst_100 = arith.constant dense<0.000000e+00> : vector<8xf32>
      %164 = vector.multi_reduction <add>, %163, %cst_100 [1] : vector<8x48xf32> to vector<8xf32>
      %165 = vector.shape_cast %164 : vector<8xf32> to vector<8x1xf32>
      %cst_101 = arith.constant 4.800000e+01 : f32
      %166 = vector.broadcast %cst_101 : f32 to vector<8x1xf32>
      %167 = arith.divf %165, %166 : vector<8x1xf32>
      %168 = vector.broadcast %160 : vector<8x1xf32> to vector<8x48xf32>
      %169 = arith.subf %154, %168 : vector<8x48xf32>
      %cst_102 = arith.constant 9.99999974E-6 : f32
      %170 = vector.broadcast %cst_102 : f32 to vector<8x1xf32>
      %171 = arith.addf %167, %170 : vector<8x1xf32>
      %172 = math.rsqrt %171 : vector<8x1xf32>
      %173 = vector.broadcast %172 : vector<8x1xf32> to vector<8x48xf32>
      %174 = arith.mulf %169, %173 : vector<8x48xf32>
      %175 = vector.broadcast %155 : vector<1x48xf32> to vector<8x48xf32>
      %176 = arith.mulf %174, %175 : vector<8x48xf32>
      %177 = vector.broadcast %156 : vector<1x48xf32> to vector<8x48xf32>
      %178 = arith.addf %176, %177 : vector<8x48xf32>
      %c0_103 = arith.constant 0 : index
      %c0_104 = arith.constant 0 : index
      %179 = vector.load %arg5[%c0_103, %c0_104] : memref<48x144xf32, #tpu.memory_space<vmem>>, vector<48x144xf32>
      %cst_105 = arith.constant dense<0.000000e+00> : vector<8x144xf32>
      %180 = tpu.matmul %178, %179, %cst_105 {dimension_numbers = #tpu.dot_dimension_numbers<[1], [0], [0], [1], [0, 0, 1, 1], [], []>} : vector<8x48xf32>, vector<48x144xf32>, vector<8x144xf32> -> vector<8x144xf32>
      %c0_106 = arith.constant 0 : index
      %c0_107 = arith.constant 0 : index
      %181 = vector.load %arg6[%c0_106, %c0_107] : memref<1x144xf32, #tpu.memory_space<vmem>>, vector<1x144xf32>
      %182 = vector.broadcast %181 : vector<1x144xf32> to vector<8x144xf32>
      %183 = arith.addf %180, %182 : vector<8x144xf32>
      %184 = vector.extract_strided_slice %183 {offsets = [0, 0], sizes = [8, 48], strides = [1, 1]} : vector<8x144xf32> to vector<8x48xf32>
      %cst_108 = arith.constant 2.500000e-01 : f32
      %185 = vector.broadcast %cst_108 : f32 to vector<8x48xf32>
      %186 = arith.mulf %184, %185 : vector<8x48xf32>
      %c0_109 = arith.constant 0 : index
      %c0_110 = arith.constant 0 : index
      %187 = vector.load %arg16[%c0_109, %c0_110] : memref<8x48xf32, #tpu.memory_space<vmem>>, vector<8x48xf32>
      tpu.vector_store %arg16[%c0_109, %c0_110], %186 {strides = array<i32>} : memref<8x48xf32, #tpu.memory_space<vmem>>, vector<8x48xf32>,
      %188 = vector.extract_strided_slice %183 {offsets = [0, 48], sizes = [8, 48], strides = [1, 1]} : vector<8x144xf32> to vector<8x48xf32>
      %189 = tpu.transpose %188, [1, 0] : vector<8x48xf32> -> vector<48x8xf32>
      %c0_111 = arith.constant 0 : index
      %c0_112 = arith.constant 0 : index
      %190 = vector.load %arg17[%c0_111, %c0_112] : memref<48x8xf32, #tpu.memory_space<vmem>>, vector<48x8xf32>
      tpu.vector_store %arg17[%c0_111, %c0_112], %189 {strides = array<i32>} : memref<48x8xf32, #tpu.memory_space<vmem>>, vector<48x8xf32>,
      %191 = vector.extract_strided_slice %183 {offsets = [0, 96], sizes = [8, 48], strides = [1, 1]} : vector<8x144xf32> to vector<8x48xf32>
      %c0_113 = arith.constant 0 : index
      %c0_114 = arith.constant 0 : index
      %192 = vector.load %arg18[%c0_113, %c0_114] : memref<8x48xf32, #tpu.memory_space<vmem>>, vector<8x48xf32>
      tpu.vector_store %arg18[%c0_113, %c0_114], %191 {strides = array<i32>} : memref<8x48xf32, #tpu.memory_space<vmem>>, vector<8x48xf32>,
    } else {
    }
    %c8_i32 = arith.constant 8 : i32
    %3 = arith.muli %arg1, %c8_i32 : i32
    %4 = tpu.assume_multiple %3, 8 : i32
    %5 = arith.index_cast %4 : i32 to index
    %c0 = arith.constant 0 : index
    %6 = vector.load %arg16[%5, %c0] : memref<8x48xf32, #tpu.memory_space<vmem>>, vector<8x16xf32>
    %c0_1 = arith.constant 0 : index
    %c0_2 = arith.constant 0 : index
    %7 = vector.load %arg17[%c0_1, %c0_2] : memref<48x8xf32, #tpu.memory_space<vmem>>, vector<16x8xf32>
    %cst = arith.constant dense<0.000000e+00> : vector<8x8xf32>
    %8 = tpu.matmul %6, %7, %cst {dimension_numbers = #tpu.dot_dimension_numbers<[1], [0], [0], [1], [0, 0, 1, 1], [], []>} : vector<8x16xf32>, vector<16x8xf32>, vector<8x8xf32> -> vector<8x8xf32>
    %cst_3 = arith.constant dense<0xFF800000> : vector<8xf32>
    %9 = vector.multi_reduction <maximumf>, %8, %cst_3 [1] : vector<8x8xf32> to vector<8xf32>
    %10 = vector.shape_cast %9 : vector<8xf32> to vector<8x1xf32>
    %11 = vector.broadcast %10 : vector<8x1xf32> to vector<8x8xf32>
    %12 = arith.subf %8, %11 : vector<8x8xf32>
    %13 = math.exp %12 : vector<8x8xf32>
    %cst_4 = arith.constant dense<0.000000e+00> : vector<8xf32>
    %14 = vector.multi_reduction <add>, %13, %cst_4 [1] : vector<8x8xf32> to vector<8xf32>
    %15 = vector.shape_cast %14 : vector<8xf32> to vector<8x1xf32>
    %16 = tpu.reciprocal %15 {approx = true} : vector<8x1xf32> -> vector<8x1xf32>
    %17 = vector.broadcast %16 : vector<8x1xf32> to vector<8x8xf32>
    %18 = arith.mulf %13, %17 : vector<8x8xf32>
    %c0_5 = arith.constant 0 : index
    %c0_6 = arith.constant 0 : index
    %19 = vector.load %arg18[%c0_5, %c0_6] : memref<8x48xf32, #tpu.memory_space<vmem>>, vector<8x16xf32>
    %cst_7 = arith.constant dense<0.000000e+00> : vector<8x16xf32>
    %20 = tpu.matmul %18, %19, %cst_7 {dimension_numbers = #tpu.dot_dimension_numbers<[1], [0], [0], [1], [0, 0, 1, 1], [], []>} : vector<8x8xf32>, vector<8x16xf32>, vector<8x16xf32> -> vector<8x16xf32>
    %c0_8 = arith.constant 0 : index
    %c0_9 = arith.constant 0 : index
    %21 = vector.load %arg19[%c0_8, %c0_9] : memref<8x48xf32, #tpu.memory_space<vmem>>, vector<8x16xf32>
    tpu.vector_store %arg19[%c0_8, %c0_9], %20 {strides = array<i32>} : memref<8x48xf32, #tpu.memory_space<vmem>>, vector<8x16xf32>,
    %22 = arith.index_cast %4 : i32 to index
    %c16 = arith.constant 16 : index
    %23 = vector.load %arg16[%22, %c16] : memref<8x48xf32, #tpu.memory_space<vmem>>, vector<8x16xf32>
    %c16_10 = arith.constant 16 : index
    %c0_11 = arith.constant 0 : index
    %24 = vector.load %arg17[%c16_10, %c0_11] : memref<48x8xf32, #tpu.memory_space<vmem>>, vector<16x8xf32>
    %cst_12 = arith.constant dense<0.000000e+00> : vector<8x8xf32>
    %25 = tpu.matmul %23, %24, %cst_12 {dimension_numbers = #tpu.dot_dimension_numbers<[1], [0], [0], [1], [0, 0, 1, 1], [], []>} : vector<8x16xf32>, vector<16x8xf32>, vector<8x8xf32> -> vector<8x8xf32>
    %cst_13 = arith.constant dense<0xFF800000> : vector<8xf32>
    %26 = vector.multi_reduction <maximumf>, %25, %cst_13 [1] : vector<8x8xf32> to vector<8xf32>
    %27 = vector.shape_cast %26 : vector<8xf32> to vector<8x1xf32>
    %28 = vector.broadcast %27 : vector<8x1xf32> to vector<8x8xf32>
    %29 = arith.subf %25, %28 : vector<8x8xf32>
    %30 = math.exp %29 : vector<8x8xf32>
    %cst_14 = arith.constant dense<0.000000e+00> : vector<8xf32>
    %31 = vector.multi_reduction <add>, %30, %cst_14 [1] : vector<8x8xf32> to vector<8xf32>
    %32 = vector.shape_cast %31 : vector<8xf32> to vector<8x1xf32>
    %33 = tpu.reciprocal %32 {approx = true} : vector<8x1xf32> -> vector<8x1xf32>
    %34 = vector.broadcast %33 : vector<8x1xf32> to vector<8x8xf32>
    %35 = arith.mulf %30, %34 : vector<8x8xf32>
    %c0_15 = arith.constant 0 : index
    %c16_16 = arith.constant 16 : index
    %36 = vector.load %arg18[%c0_15, %c16_16] : memref<8x48xf32, #tpu.memory_space<vmem>>, vector<8x16xf32>
    %cst_17 = arith.constant dense<0.000000e+00> : vector<8x16xf32>
    %37 = tpu.matmul %35, %36, %cst_17 {dimension_numbers = #tpu.dot_dimension_numbers<[1], [0], [0], [1], [0, 0, 1, 1], [], []>} : vector<8x8xf32>, vector<8x16xf32>, vector<8x16xf32> -> vector<8x16xf32>
    %c0_18 = arith.constant 0 : index
    %c16_19 = arith.constant 16 : index
    %38 = vector.load %arg19[%c0_18, %c16_19] : memref<8x48xf32, #tpu.memory_space<vmem>>, vector<8x16xf32>
    tpu.vector_store %arg19[%c0_18, %c16_19], %37 {strides = array<i32>} : memref<8x48xf32, #tpu.memory_space<vmem>>, vector<8x16xf32>,
    %39 = arith.index_cast %4 : i32 to index
    %c32 = arith.constant 32 : index
    %40 = vector.load %arg16[%39, %c32] : memref<8x48xf32, #tpu.memory_space<vmem>>, vector<8x16xf32>
    %c32_20 = arith.constant 32 : index
    %c0_21 = arith.constant 0 : index
    %41 = vector.load %arg17[%c32_20, %c0_21] : memref<48x8xf32, #tpu.memory_space<vmem>>, vector<16x8xf32>
    %cst_22 = arith.constant dense<0.000000e+00> : vector<8x8xf32>
    %42 = tpu.matmul %40, %41, %cst_22 {dimension_numbers = #tpu.dot_dimension_numbers<[1], [0], [0], [1], [0, 0, 1, 1], [], []>} : vector<8x16xf32>, vector<16x8xf32>, vector<8x8xf32> -> vector<8x8xf32>
    %cst_23 = arith.constant dense<0xFF800000> : vector<8xf32>
    %43 = vector.multi_reduction <maximumf>, %42, %cst_23 [1] : vector<8x8xf32> to vector<8xf32>
    %44 = vector.shape_cast %43 : vector<8xf32> to vector<8x1xf32>
    %45 = vector.broadcast %44 : vector<8x1xf32> to vector<8x8xf32>
    %46 = arith.subf %42, %45 : vector<8x8xf32>
    %47 = math.exp %46 : vector<8x8xf32>
    %cst_24 = arith.constant dense<0.000000e+00> : vector<8xf32>
    %48 = vector.multi_reduction <add>, %47, %cst_24 [1] : vector<8x8xf32> to vector<8xf32>
    %49 = vector.shape_cast %48 : vector<8xf32> to vector<8x1xf32>
    %50 = tpu.reciprocal %49 {approx = true} : vector<8x1xf32> -> vector<8x1xf32>
    %51 = vector.broadcast %50 : vector<8x1xf32> to vector<8x8xf32>
    %52 = arith.mulf %47, %51 : vector<8x8xf32>
    %c0_25 = arith.constant 0 : index
    %c32_26 = arith.constant 32 : index
    %53 = vector.load %arg18[%c0_25, %c32_26] : memref<8x48xf32, #tpu.memory_space<vmem>>, vector<8x16xf32>
    %cst_27 = arith.constant dense<0.000000e+00> : vector<8x16xf32>
    %54 = tpu.matmul %52, %53, %cst_27 {dimension_numbers = #tpu.dot_dimension_numbers<[1], [0], [0], [1], [0, 0, 1, 1], [], []>} : vector<8x8xf32>, vector<8x16xf32>, vector<8x16xf32> -> vector<8x16xf32>
    %c0_28 = arith.constant 0 : index
    %c32_29 = arith.constant 32 : index
    %55 = vector.load %arg19[%c0_28, %c32_29] : memref<8x48xf32, #tpu.memory_space<vmem>>, vector<8x16xf32>
    tpu.vector_store %arg19[%c0_28, %c32_29], %54 {strides = array<i32>} : memref<8x48xf32, #tpu.memory_space<vmem>>, vector<8x16xf32>,
    %c0_30 = arith.constant 0 : index
    %56 = arith.index_cast %4 : i32 to index
    %c0_31 = arith.constant 0 : index
    %57 = vector.load %arg2[%c0_30, %56, %c0_31] : memref<1x8x48xf32, #tpu.memory_space<vmem>>, vector<1x8x48xf32>
    %58 = vector.shape_cast %57 : vector<1x8x48xf32> to vector<8x48xf32>
    %c0_32 = arith.constant 0 : index
    %c0_33 = arith.constant 0 : index
    %59 = vector.load %arg19[%c0_32, %c0_33] : memref<8x48xf32, #tpu.memory_space<vmem>>, vector<8x48xf32>
    %c0_34 = arith.constant 0 : index
    %c0_35 = arith.constant 0 : index
    %60 = vector.load %arg7[%c0_34, %c0_35] : memref<48x48xf32, #tpu.memory_space<vmem>>, vector<48x48xf32>
    %cst_36 = arith.constant dense<0.000000e+00> : vector<8x48xf32>
    %61 = tpu.matmul %59, %60, %cst_36 {dimension_numbers = #tpu.dot_dimension_numbers<[1], [0], [0], [1], [0, 0, 1, 1], [], []>} : vector<8x48xf32>, vector<48x48xf32>, vector<8x48xf32> -> vector<8x48xf32>
    %c0_37 = arith.constant 0 : index
    %c0_38 = arith.constant 0 : index
    %62 = vector.load %arg8[%c0_37, %c0_38] : memref<1x48xf32, #tpu.memory_space<vmem>>, vector<1x48xf32>
    %63 = vector.broadcast %62 : vector<1x48xf32> to vector<8x48xf32>
    %64 = arith.addf %61, %63 : vector<8x48xf32>
    %65 = arith.addf %64, %58 : vector<8x48xf32>
    %c0_39 = arith.constant 0 : index
    %c0_40 = arith.constant 0 : index
    %66 = vector.load %arg9[%c0_39, %c0_40] : memref<1x48xf32, #tpu.memory_space<vmem>>, vector<1x48xf32>
    %c0_41 = arith.constant 0 : index
    %c0_42 = arith.constant 0 : index
    %67 = vector.load %arg10[%c0_41, %c0_42] : memref<1x48xf32, #tpu.memory_space<vmem>>, vector<1x48xf32>
    %cst_43 = arith.constant dense<0.000000e+00> : vector<8xf32>
    %68 = vector.multi_reduction <add>, %65, %cst_43 [1] : vector<8x48xf32> to vector<8xf32>
    %69 = vector.shape_cast %68 : vector<8xf32> to vector<8x1xf32>
    %cst_44 = arith.constant 4.800000e+01 : f32
    %70 = vector.broadcast %cst_44 : f32 to vector<8x1xf32>
    %71 = arith.divf %69, %70 : vector<8x1xf32>
    %72 = vector.broadcast %71 : vector<8x1xf32> to vector<8x48xf32>
    %73 = arith.subf %65, %72 : vector<8x48xf32>
    %74 = arith.mulf %73, %73 : vector<8x48xf32>
    %cst_45 = arith.constant dense<0.000000e+00> : vector<8xf32>
    %75 = vector.multi_reduction <add>, %74, %cst_45 [1] : vector<8x48xf32> to vector<8xf32>
    %76 = vector.shape_cast %75 : vector<8xf32> to vector<8x1xf32>
    %cst_46 = arith.constant 4.800000e+01 : f32
    %77 = vector.broadcast %cst_46 : f32 to vector<8x1xf32>
    %78 = arith.divf %76, %77 : vector<8x1xf32>
    %79 = vector.broadcast %71 : vector<8x1xf32> to vector<8x48xf32>
    %80 = arith.subf %65, %79 : vector<8x48xf32>
    %cst_47 = arith.constant 9.99999974E-6 : f32
    %81 = vector.broadcast %cst_47 : f32 to vector<8x1xf32>
    %82 = arith.addf %78, %81 : vector<8x1xf32>
    %83 = math.rsqrt %82 : vector<8x1xf32>
    %84 = vector.broadcast %83 : vector<8x1xf32> to vector<8x48xf32>
    %85 = arith.mulf %80, %84 : vector<8x48xf32>
    %86 = vector.broadcast %66 : vector<1x48xf32> to vector<8x48xf32>
    %87 = arith.mulf %85, %86 : vector<8x48xf32>
    %88 = vector.broadcast %67 : vector<1x48xf32> to vector<8x48xf32>
    %89 = arith.addf %87, %88 : vector<8x48xf32>
    %c0_48 = arith.constant 0 : index
    %c0_49 = arith.constant 0 : index
    %90 = vector.load %arg19[%c0_48, %c0_49] : memref<8x48xf32, #tpu.memory_space<vmem>>, vector<8x48xf32>
    tpu.vector_store %arg19[%c0_48, %c0_49], %89 {strides = array<i32>} : memref<8x48xf32, #tpu.memory_space<vmem>>, vector<8x48xf32>,
    %c0_50 = arith.constant 0 : index
    %c0_51 = arith.constant 0 : index
    %91 = vector.load %arg14[%c0_50, %c0_51] : memref<1x48xf32, #tpu.memory_space<vmem>>, vector<1x48xf32>
    %92 = vector.broadcast %91 : vector<1x48xf32> to vector<8x48xf32>
    %93 = arith.addf %65, %92 : vector<8x48xf32>
    %c0_52 = arith.constant 0 : index
    %c0_53 = arith.constant 0 : index
    %94 = vector.load %arg20[%c0_52, %c0_53] : memref<8x48xf32, #tpu.memory_space<vmem>>, vector<8x48xf32>
    tpu.vector_store %arg20[%c0_52, %c0_53], %93 {strides = array<i32>} : memref<8x48xf32, #tpu.memory_space<vmem>>, vector<8x48xf32>,
    %c0_54 = arith.constant 0 : index
    %c0_55 = arith.constant 0 : index
    %95 = vector.load %arg19[%c0_54, %c0_55] : memref<8x48xf32, #tpu.memory_space<vmem>>, vector<8x48xf32>
    %c0_56 = arith.constant 0 : index
    %c0_57 = arith.constant 0 : index
    %c0_58 = arith.constant 0 : index
    %96 = vector.load %arg11[%c0_56, %c0_57, %c0_58] : memref<1x48x64xf32, #tpu.memory_space<vmem>>, vector<1x48x64xf32>
    %97 = vector.shape_cast %96 : vector<1x48x64xf32> to vector<48x64xf32>
    %cst_59 = arith.constant dense<0.000000e+00> : vector<8x64xf32>
    %98 = tpu.matmul %95, %97, %cst_59 {dimension_numbers = #tpu.dot_dimension_numbers<[1], [0], [0], [1], [0, 0, 1, 1], [], []>} : vector<8x48xf32>, vector<48x64xf32>, vector<8x64xf32> -> vector<8x64xf32>
    %c0_60 = arith.constant 0 : index
    %c0_61 = arith.constant 0 : index
    %c0_62 = arith.constant 0 : index
    %99 = vector.load %arg12[%c0_60, %c0_61, %c0_62] : memref<1x1x64xf32, #tpu.memory_space<vmem>>, vector<1x1x64xf32>
    %100 = vector.shape_cast %99 : vector<1x1x64xf32> to vector<1x64xf32>
    %101 = vector.broadcast %100 : vector<1x64xf32> to vector<8x64xf32>
    %102 = arith.addf %98, %101 : vector<8x64xf32>
    %cst_63 = arith.constant 5.000000e-01 : f32
    %103 = vector.broadcast %cst_63 : f32 to vector<8x64xf32>
    %104 = arith.mulf %103, %102 : vector<8x64xf32>
    %cst_64 = arith.constant 0.707106769 : f32
    %105 = vector.broadcast %cst_64 : f32 to vector<8x64xf32>
    %106 = arith.mulf %102, %105 : vector<8x64xf32>
    %cst_65 = arith.constant 0.000000e+00 : f32
    %107 = vector.broadcast %cst_65 : f32 to vector<8x64xf32>
    %108 = arith.cmpf oge, %106, %107 : vector<8x64xf32>
    %cst_66 = arith.constant 1.000000e+00 : f32
    %cst_67 = arith.constant -1.000000e+00 : f32
    %109 = vector.broadcast %cst_66 : f32 to vector<8x64xf32>
    %110 = vector.broadcast %cst_67 : f32 to vector<8x64xf32>
    %111 = arith.select %108, %109, %110 : vector<8x64xi1>, vector<8x64xf32>
    %112 = math.absf %106 : vector<8x64xf32>
    %cst_68 = arith.constant 0.327591091 : f32
    %113 = vector.broadcast %cst_68 : f32 to vector<8x64xf32>
    %114 = arith.mulf %113, %112 : vector<8x64xf32>
    %cst_69 = arith.constant 1.000000e+00 : f32
    %115 = vector.broadcast %cst_69 : f32 to vector<8x64xf32>
    %116 = arith.addf %115, %114 : vector<8x64xf32>
    %117 = tpu.reciprocal %116 {approx = true} : vector<8x64xf32> -> vector<8x64xf32>
    %cst_70 = arith.constant 1.06140542 : f32
    %118 = vector.broadcast %cst_70 : f32 to vector<8x64xf32>
    %119 = arith.mulf %118, %117 : vector<8x64xf32>
    %cst_71 = arith.constant -1.45315206 : f32
    %120 = vector.broadcast %cst_71 : f32 to vector<8x64xf32>
    %121 = arith.addf %119, %120 : vector<8x64xf32>
    %122 = arith.mulf %121, %117 : vector<8x64xf32>
    %cst_72 = arith.constant 1.42141378 : f32
    %123 = vector.broadcast %cst_72 : f32 to vector<8x64xf32>
    %124 = arith.addf %122, %123 : vector<8x64xf32>
    %125 = arith.mulf %124, %117 : vector<8x64xf32>
    %cst_73 = arith.constant -0.284496725 : f32
    %126 = vector.broadcast %cst_73 : f32 to vector<8x64xf32>
    %127 = arith.addf %125, %126 : vector<8x64xf32>
    %128 = arith.mulf %127, %117 : vector<8x64xf32>
    %cst_74 = arith.constant 0.254829586 : f32
    %129 = vector.broadcast %cst_74 : f32 to vector<8x64xf32>
    %130 = arith.addf %128, %129 : vector<8x64xf32>
    %131 = arith.mulf %130, %117 : vector<8x64xf32>
    %cst_75 = arith.constant 0.000000e+00 : f32
    %132 = vector.broadcast %cst_75 : f32 to vector<8x64xf32>
    %133 = arith.subf %132, %112 : vector<8x64xf32>
    %134 = arith.mulf %133, %112 : vector<8x64xf32>
    %135 = math.exp %134 : vector<8x64xf32>
    %136 = arith.mulf %131, %135 : vector<8x64xf32>
    %cst_76 = arith.constant 1.000000e+00 : f32
    %137 = vector.broadcast %cst_76 : f32 to vector<8x64xf32>
    %138 = arith.subf %137, %136 : vector<8x64xf32>
    %139 = arith.mulf %111, %138 : vector<8x64xf32>
    %cst_77 = arith.constant 1.000000e+00 : f32
    %140 = vector.broadcast %cst_77 : f32 to vector<8x64xf32>
    %141 = arith.addf %140, %139 : vector<8x64xf32>
    %142 = arith.mulf %104, %141 : vector<8x64xf32>
    %c0_78 = arith.constant 0 : index
    %c0_79 = arith.constant 0 : index
    %143 = vector.load %arg20[%c0_78, %c0_79] : memref<8x48xf32, #tpu.memory_space<vmem>>, vector<8x48xf32>
    %c0_80 = arith.constant 0 : index
    %c0_81 = arith.constant 0 : index
    %c0_82 = arith.constant 0 : index
    %144 = vector.load %arg13[%c0_80, %c0_81, %c0_82] : memref<1x64x48xf32, #tpu.memory_space<vmem>>, vector<1x64x48xf32>
    %145 = vector.shape_cast %144 : vector<1x64x48xf32> to vector<64x48xf32>
    %cst_83 = arith.constant dense<0.000000e+00> : vector<8x48xf32>
    %146 = tpu.matmul %142, %145, %cst_83 {dimension_numbers = #tpu.dot_dimension_numbers<[1], [0], [0], [1], [0, 0, 1, 1], [], []>} : vector<8x64xf32>, vector<64x48xf32>, vector<8x48xf32> -> vector<8x48xf32>
    %147 = arith.addf %143, %146 : vector<8x48xf32>
    %c0_84 = arith.constant 0 : index
    %c0_85 = arith.constant 0 : index
    %148 = vector.load %arg20[%c0_84, %c0_85] : memref<8x48xf32, #tpu.memory_space<vmem>>, vector<8x48xf32>
    tpu.vector_store %arg20[%c0_84, %c0_85], %147 {strides = array<i32>} : memref<8x48xf32, #tpu.memory_space<vmem>>, vector<8x48xf32>,
    %c0_86 = arith.constant 0 : index
    %c0_87 = arith.constant 0 : index
    %149 = vector.load %arg20[%c0_86, %c0_87] : memref<8x48xf32, #tpu.memory_space<vmem>>, vector<8x48xf32>
    %c0_88 = arith.constant 0 : index
    %c0_89 = arith.constant 0 : index
    %c0_90 = arith.constant 0 : index
    %150 = vector.load %arg15[%c0_88, %c0_89, %c0_90] : memref<1x8x48xf32, #tpu.memory_space<vmem>>, vector<1x8x48xf32>
    %151 = vector.shape_cast %150 : vector<1x8x48xf32> to vector<8x48xf32>
    %152 = vector.shape_cast %149 : vector<8x48xf32> to vector<1x8x48xf32>
    tpu.vector_store %arg15[%c0_88, %c0_89, %c0_90], %152 {strides = array<i32>} : memref<1x8x48xf32, #tpu.memory_space<vmem>>, vector<1x8x48xf32>,
    return
  }
  func.func @transform_0(%arg0: i32, %arg1: i32) -> (i32, i32, i32) {
    %c0_i32 = arith.constant 0 : i32
    %c0_i32_0 = arith.constant 0 : i32
    %c0_i32_1 = arith.constant 0 : i32
    return %arg0, %c0_i32, %c0_i32_0 : i32, i32, i32
  }
  func.func @transform_1(%arg0: i32, %arg1: i32) -> (i32, i32) {
    %c0_i32 = arith.constant 0 : i32
    %c0_i32_0 = arith.constant 0 : i32
    %c0_i32_1 = arith.constant 0 : i32
    return %c0_i32, %c0_i32_0 : i32, i32
  }
  func.func @transform_2(%arg0: i32, %arg1: i32) -> (i32, i32) {
    %c0_i32 = arith.constant 0 : i32
    %c0_i32_0 = arith.constant 0 : i32
    %c0_i32_1 = arith.constant 0 : i32
    return %c0_i32, %c0_i32_0 : i32, i32
  }
  func.func @transform_3(%arg0: i32, %arg1: i32) -> (i32, i32) {
    %c0_i32 = arith.constant 0 : i32
    %c0_i32_0 = arith.constant 0 : i32
    %c0_i32_1 = arith.constant 0 : i32
    return %c0_i32, %c0_i32_0 : i32, i32
  }
  func.func @transform_4(%arg0: i32, %arg1: i32) -> (i32, i32) {
    %c0_i32 = arith.constant 0 : i32
    %c0_i32_0 = arith.constant 0 : i32
    %c0_i32_1 = arith.constant 0 : i32
    return %c0_i32, %c0_i32_0 : i32, i32
  }
  func.func @transform_5(%arg0: i32, %arg1: i32) -> (i32, i32) {
    %c0_i32 = arith.constant 0 : i32
    %c0_i32_0 = arith.constant 0 : i32
    %c0_i32_1 = arith.constant 0 : i32
    return %c0_i32, %c0_i32_0 : i32, i32
  }
  func.func @transform_6(%arg0: i32, %arg1: i32) -> (i32, i32) {
    %c0_i32 = arith.constant 0 : i32
    %c0_i32_0 = arith.constant 0 : i32
    %c0_i32_1 = arith.constant 0 : i32
    return %c0_i32, %c0_i32_0 : i32, i32
  }
  func.func @transform_7(%arg0: i32, %arg1: i32) -> (i32, i32) {
    %c0_i32 = arith.constant 0 : i32
    %c0_i32_0 = arith.constant 0 : i32
    %c0_i32_1 = arith.constant 0 : i32
    return %c0_i32, %c0_i32_0 : i32, i32
  }
  func.func @transform_8(%arg0: i32, %arg1: i32) -> (i32, i32) {
    %c0_i32 = arith.constant 0 : i32
    %c0_i32_0 = arith.constant 0 : i32
    %c0_i32_1 = arith.constant 0 : i32
    return %c0_i32, %c0_i32_0 : i32, i32
  }
  func.func @transform_9(%arg0: i32, %arg1: i32) -> (i32, i32, i32) {
    %c0_i32 = arith.constant 0 : i32
    %c0_i32_0 = arith.constant 0 : i32
    %c0_i32_1 = arith.constant 0 : i32
    %c0_i32_2 = arith.constant 0 : i32
    return %c0_i32, %c0_i32_0, %c0_i32_1 : i32, i32, i32
  }
  func.func @transform_10(%arg0: i32, %arg1: i32) -> (i32, i32, i32) {
    %c0_i32 = arith.constant 0 : i32
    %c0_i32_0 = arith.constant 0 : i32
    %c0_i32_1 = arith.constant 0 : i32
    %c0_i32_2 = arith.constant 0 : i32
    return %c0_i32, %c0_i32_0, %c0_i32_1 : i32, i32, i32
  }
  func.func @transform_11(%arg0: i32, %arg1: i32) -> (i32, i32, i32) {
    %c0_i32 = arith.constant 0 : i32
    %c0_i32_0 = arith.constant 0 : i32
    %c0_i32_1 = arith.constant 0 : i32
    %c0_i32_2 = arith.constant 0 : i32
    return %c0_i32, %c0_i32_0, %c0_i32_1 : i32, i32, i32
  }
  func.func @transform_12(%arg0: i32, %arg1: i32) -> (i32, i32) {
    %c0_i32 = arith.constant 0 : i32
    %c0_i32_0 = arith.constant 0 : i32
    %c0_i32_1 = arith.constant 0 : i32
    return %c0_i32, %c0_i32_0 : i32, i32
  }
  func.func @transform_13(%arg0: i32, %arg1: i32) -> (i32, i32, i32) {
    %c0_i32 = arith.constant 0 : i32
    %c0_i32_0 = arith.constant 0 : i32
    return %arg0, %arg1, %c0_i32 : i32, i32, i32
  }
}

</mosaic_0001>

<llo_original>
// kernel: tpu_custom_call.1
$region0: #{tpu_custom_call.1}
  #allocation0 [shape = 'u32[]', space=smem, size = 0x4, offset = 0x4, fixed_abs, tag = 'smem constant byte address 0x4 - core index']
  #allocation1 [shape = 'u32[72,128]{1,0:T(1,128)}', space=vmem, size = 0x9000, scoped, tag = 'internal scratch']
  #allocation2 [shape = 'f32[8,48]{1,0:T(8,128)}', space=vmem, size = 0x1000, scoped, tag = 'scratch operand']
  #allocation3 [shape = 'f32[48,8]{1,0:T(8,128)}', space=vmem, size = 0x6000, scoped, tag = 'scratch operand']
  #allocation4 [shape = 'f32[8,48]{1,0:T(8,128)}', space=vmem, size = 0x1000, scoped, tag = 'scratch operand']
  #allocation5 [shape = 'f32[8,48]{1,0:T(8,128)}', space=vmem, size = 0x1000, scoped, tag = 'scratch operand']
  #allocation6 [shape = 'f32[8,48]{1,0:T(8,128)}', space=vmem, size = 0x1000, scoped, tag = 'scratch operand']
  %s0 = inlined_call_operand.vmem [shape: f32[2,8,48], index: 0, kind: input, shape index: {}]
  %s1 = inlined_call_operand.hbm [shape: f32[1,48], index: 1, kind: input, shape index: {}]
  %s2 = inlined_call_operand.hbm [shape: f32[1,48], index: 2, kind: input, shape index: {}]
  %s3 = inlined_call_operand.vmem [shape: f32[48,144], index: 3, kind: input, shape index: {}]
  %s4 = inlined_call_operand.vmem [shape: f32[1,144], index: 4, kind: input, shape index: {}]
  %s5 = inlined_call_operand.hbm [shape: f32[48,48], index: 5, kind: input, shape index: {}]
  %s6 = inlined_call_operand.vmem [shape: f32[1,48], index: 6, kind: input, shape index: {}]
  %s7 = inlined_call_operand.vmem [shape: f32[1,48], index: 7, kind: input, shape index: {}]
  %s8 = inlined_call_operand.vmem [shape: f32[1,48], index: 8, kind: input, shape index: {}]
  %s9 = inlined_call_operand.hbm [shape: f32[1,48,64], index: 9, kind: input, shape index: {}]
  %s10 = inlined_call_operand.vmem [shape: f32[1,1,64], index: 10, kind: input, shape index: {}]
  %s11 = inlined_call_operand.vmem [shape: f32[1,64,48], index: 11, kind: input, shape index: {}]
  %s12 = inlined_call_operand.vmem [shape: f32[1,48], index: 12, kind: input, shape index: {}]
  %s13 = inlined_call_operand.hbm [shape: f32[2,8,48], index: 13, kind: output, shape index: {}]
  %s14 = sld [smem:[#allocation0]]
  $region105: #{tpu_custom_call.1} parent=0
    _
  %s16 = ssub.s32 1, %s14
  %s17 = scalar_select 0, %s16, %s14
  $region1: #{tpu_custom_call.1} parent=0
    #allocation7 [shape = 'u8[512]{0}', space=vmem, size = 0x400, scoped, tag = 'input window, operand 1, single buffered']
    #allocation8 [shape = 's32[2]{0}', space=sflag, size = 0x8, scoped, tag = 'scoped memory for tpu_custom_call.1']
    #allocation9 [shape = 's32[2]{0}', space=sflag, size = 0x8, scoped, tag = 'scoped memory for tpu_custom_call.1']
    #allocation10 [shape = 'u8[512]{0}', space=vmem, size = 0x400, scoped, tag = 'input window, operand 2, single buffered']
    #allocation11 [shape = 's32[1]{0}', space=sflag, size = 0x4, scoped, tag = 'scoped memory for tpu_custom_call.1']
    #allocation12 [shape = 'u8[24576]{0}', space=vmem, size = 0x6000, scoped, tag = 'input window, operand 5, single buffered']
    #allocation13 [shape = 'u8[24576]{0}', space=vmem, size = 0x6000, scoped, tag = 'input window, operand 9, single buffered']
    #allocation14 [shape = 's32[1]{0}', space=sflag, size = 0x4, scoped, tag = 'scoped memory for tpu_custom_call.1']
    #allocation15 [shape = 'u8[8192]{0}', space=vmem, size = 0x2000, scoped, tag = 'output window, operand 0']
    %18 = vsyncpa [#allocation8], 0
    %19 = vsyncpa [#allocation11], 0
    %20 = vsyncpa [#allocation14], 0
    %21 = vsyncpa [#allocation9], 0
    %s22 = scalar_lea.sflag [#allocation9], 1
    %23 = vsyncpa %s22, 0
    loop: start=0, step=1, limit=4
    $region2: #{tpu_custom_call.1} parent=1 // loop_pre_header
      _
    $region3: #{tpu_custom_call.1} parent=1 // loop_header
      %s25 = sphi 0, %s29
      %p26 = scmp.ge.s32.totalorder %s25, 4
      %s32 = sphi 0, %s44
      %s33 = sphi 0, %s40
      %s34 = sphi 0, %s32
      %s35 = sphi 0, %s33
      %s36 = sphi 0, %s34
      %s37 = sphi 0, %s35
      %s47 = sphi 0, %s49
      %s50 = sphi 0, %s47
      %s51 = sphi 0, %s50
      %s67 = sphi 0, %s51
      %s71 = sphi 0, %s71
      %s73 = sphi 0, %s71
      %s74 = sphi 0, %s73
      %s88 = sphi 0, %s74
      %s92 = sphi 0, %s92
      %s94 = sphi 0, %s92
      %s95 = sphi 0, %s94
      %s109 = sphi 0, %s95
      %s113 = sphi 0, %s113
      %s115 = sphi 0, %s113
      %s116 = sphi 0, %s115
      %s130 = sphi 0, %s116
      %s134 = sphi 0, %s134
      %s136 = sphi 0, %s134
      %s137 = sphi 0, %s136
      %s151 = sphi 0, %s137
      %s155 = sphi 0, %s155
      %s157 = sphi 0, %s155
      %s158 = sphi 0, %s157
      %s172 = sphi 0, %s158
      %s176 = sphi 0, %s176
      %s178 = sphi 0, %s176
      %s179 = sphi 0, %s178
      %s193 = sphi 0, %s179
      %s197 = sphi 0, %s197
      %s199 = sphi 0, %s197
      %s200 = sphi 0, %s199
      %s214 = sphi 0, %s200
      %s218 = sphi 0, %s218
      %s220 = sphi 0, %s218
      %s221 = sphi 0, %s220
      %s235 = sphi 0, %s221
      %s239 = sphi 0, %s239
      %s241 = sphi 0, %s239
      %s242 = sphi 0, %s241
      %s256 = sphi 0, %s242
      %s260 = sphi 0, %s260
      %s262 = sphi 0, %s260
      %s263 = sphi 0, %s262
      %s277 = sphi 0, %s263
      %s281 = sphi 0, %s281
      %s283 = sphi 0, %s281
      %s284 = sphi 0, %s283
      %s298 = sphi 0, %s284
      %s302 = sphi 0, %s302
      %s304 = sphi 0, %s302
      %s305 = sphi 0, %s304
      %s319 = sphi 0, %s305
      %s327 = sphi 0, %s329
      %s330 = sphi 0, %s327
      %s331 = sphi 0, %s330
      %s347 = sphi 0, %s331
    $region4: #{tpu_custom_call.1} parent=1 // loop_header_branch
      %28 = sbr.rel (%p26) target = $region8
    $region5: #{tpu_custom_call.1} parent=1 // loop_body
      %s30 = ssub.s32 %s25, 1
      %s31 = ssub.s32 %s25, 2
      %s38 = sadd.s32 1, %s33
      %p39 = scmp.ge.s32.totalorder %s38, 1
      %s40 = scalar_select %p39, 0, %s38
      %s41 = sadd.s32 1, %s32
      %s42 = scalar_select %p39, %s41, %s32
      %p43 = scmp.ge.s32.totalorder %s42, 2
      %s44 = scalar_select %p43, 0, %s42
      %s45 = ssub.s32 %s32, %s44
      %p46 = scmp.eq.s32.totalorder %s45, 0
      %s48 = sadd.s32 %s47, 1
      %s49 = scalar_select %p46, %s47, %s48
      %p52 = pneg %p46
      %p53 = scmp.eq.s32.totalorder %s25, 1
      %p54 = por %p52, %p53
      %p55 = scmp.ne.s32.totalorder %s47, %s50
      %p56 = scmp.eq.s32.totalorder %s25, 0
      %p57 = por %p55, %p56
      %p58 = scmp.ne.s32.totalorder %s47, %s50
      %p59 = scmp.eq.s32.totalorder %s30, 1
      %p60 = por %p58, %p59
      %p61 = scmp.ne.s32.totalorder %s50, %s51
      %p62 = scmp.eq.s32.totalorder %s30, 0
      %p63 = por %p61, %p62
      %p64 = scmp.ne.s32.totalorder %s50, %s51
      %p65 = scmp.eq.s32.totalorder %s31, 1
      %p66 = por %p64, %p65
      %p68 = scmp.ne.s32.totalorder %s51, %s67
      %p69 = scmp.eq.s32.totalorder %s31, 0
      %p70 = por %p68, %p69
      %s72 = sadd.s32 %s71, 1
      %p75 = scmp.eq.s32.totalorder %s25, 1
      %p76 = scmp.ne.s32.totalorder %s71, %s73
      %p77 = scmp.eq.s32.totalorder %s25, 0
      %p78 = por %p76, %p77
      %p79 = scmp.ne.s32.totalorder %s71, %s73
      %p80 = scmp.eq.s32.totalorder %s30, 1
      %p81 = por %p79, %p80
      %p82 = scmp.ne.s32.totalorder %s73, %s74
      %p83 = scmp.eq.s32.totalorder %s30, 0
      %p84 = por %p82, %p83
      %p85 = scmp.ne.s32.totalorder %s73, %s74
      %p86 = scmp.eq.s32.totalorder %s31, 1
      %p87 = por %p85, %p86
      %p89 = scmp.ne.s32.totalorder %s74, %s88
      %p90 = scmp.eq.s32.totalorder %s31, 0
      %p91 = por %p89, %p90
      %s93 = sadd.s32 %s92, 1
      %p96 = scmp.eq.s32.totalorder %s25, 1
      %p97 = scmp.ne.s32.totalorder %s92, %s94
      %p98 = scmp.eq.s32.totalorder %s25, 0
      %p99 = por %p97, %p98
      %p100 = scmp.ne.s32.totalorder %s92, %s94
      %p101 = scmp.eq.s32.totalorder %s30, 1
      %p102 = por %p100, %p101
      %p103 = scmp.ne.s32.totalorder %s94, %s95
      %p104 = scmp.eq.s32.totalorder %s30, 0
      %p105 = por %p103, %p104
      %p106 = scmp.ne.s32.totalorder %s94, %s95
      %p107 = scmp.eq.s32.totalorder %s31, 1
      %p108 = por %p106, %p107
      %p110 = scmp.ne.s32.totalorder %s95, %s109
      %p111 = scmp.eq.s32.totalorder %s31, 0
      %p112 = por %p110, %p111
      %s114 = sadd.s32 %s113, 1
      %p117 = scmp.eq.s32.totalorder %s25, 1
      %p118 = scmp.ne.s32.totalorder %s113, %s115
      %p119 = scmp.eq.s32.totalorder %s25, 0
      %p120 = por %p118, %p119
      %p121 = scmp.ne.s32.totalorder %s113, %s115
      %p122 = scmp.eq.s32.totalorder %s30, 1
      %p123 = por %p121, %p122
      %p124 = scmp.ne.s32.totalorder %s115, %s116
      %p125 = scmp.eq.s32.totalorder %s30, 0
      %p126 = por %p124, %p125
      %p127 = scmp.ne.s32.totalorder %s115, %s116
      %p128 = scmp.eq.s32.totalorder %s31, 1
      %p129 = por %p127, %p128
      %p131 = scmp.ne.s32.totalorder %s116, %s130
      %p132 = scmp.eq.s32.totalorder %s31, 0
      %p133 = por %p131, %p132
      %s135 = sadd.s32 %s134, 1
      %p138 = scmp.eq.s32.totalorder %s25, 1
      %p139 = scmp.ne.s32.totalorder %s134, %s136
      %p140 = scmp.eq.s32.totalorder %s25, 0
      %p141 = por %p139, %p140
      %p142 = scmp.ne.s32.totalorder %s134, %s136
      %p143 = scmp.eq.s32.totalorder %s30, 1
      %p144 = por %p142, %p143
      %p145 = scmp.ne.s32.totalorder %s136, %s137
      %p146 = scmp.eq.s32.totalorder %s30, 0
      %p147 = por %p145, %p146
      %p148 = scmp.ne.s32.totalorder %s136, %s137
      %p149 = scmp.eq.s32.totalorder %s31, 1
      %p150 = por %p148, %p149
      %p152 = scmp.ne.s32.totalorder %s137, %s151
      %p153 = scmp.eq.s32.totalorder %s31, 0
      %p154 = por %p152, %p153
      %s156 = sadd.s32 %s155, 1
      %p159 = scmp.eq.s32.totalorder %s25, 1
      %p160 = scmp.ne.s32.totalorder %s155, %s157
      %p161 = scmp.eq.s32.totalorder %s25, 0
      %p162 = por %p160, %p161
      %p163 = scmp.ne.s32.totalorder %s155, %s157
      %p164 = scmp.eq.s32.totalorder %s30, 1
      %p165 = por %p163, %p164
      %p166 = scmp.ne.s32.totalorder %s157, %s158
      %p167 = scmp.eq.s32.totalorder %s30, 0
      %p168 = por %p166, %p167
      %p169 = scmp.ne.s32.totalorder %s157, %s158
      %p170 = scmp.eq.s32.totalorder %s31, 1
      %p171 = por %p169, %p170
      %p173 = scmp.ne.s32.totalorder %s158, %s172
      %p174 = scmp.eq.s32.totalorder %s31, 0
      %p175 = por %p173, %p174
      %s177 = sadd.s32 %s176, 1
      %p180 = scmp.eq.s32.totalorder %s25, 1
      %p181 = scmp.ne.s32.totalorder %s176, %s178
      %p182 = scmp.eq.s32.totalorder %s25, 0
      %p183 = por %p181, %p182
      %p184 = scmp.ne.s32.totalorder %s176, %s178
      %p185 = scmp.eq.s32.totalorder %s30, 1
      %p186 = por %p184, %p185
      %p187 = scmp.ne.s32.totalorder %s178, %s179
      %p188 = scmp.eq.s32.totalorder %s30, 0
      %p189 = por %p187, %p188
      %p190 = scmp.ne.s32.totalorder %s178, %s179
      %p191 = scmp.eq.s32.totalorder %s31, 1
      %p192 = por %p190, %p191
      %p194 = scmp.ne.s32.totalorder %s179, %s193
      %p195 = scmp.eq.s32.totalorder %s31, 0
      %p196 = por %p194, %p195
      %s198 = sadd.s32 %s197, 1
      %p201 = scmp.eq.s32.totalorder %s25, 1
      %p202 = scmp.ne.s32.totalorder %s197, %s199
      %p203 = scmp.eq.s32.totalorder %s25, 0
      %p204 = por %p202, %p203
      %p205 = scmp.ne.s32.totalorder %s197, %s199
      %p206 = scmp.eq.s32.totalorder %s30, 1
      %p207 = por %p205, %p206
      %p208 = scmp.ne.s32.totalorder %s199, %s200
      %p209 = scmp.eq.s32.totalorder %s30, 0
      %p210 = por %p208, %p209
      %p211 = scmp.ne.s32.totalorder %s199, %s200
      %p212 = scmp.eq.s32.totalorder %s31, 1
      %p213 = por %p211, %p212
      %p215 = scmp.ne.s32.totalorder %s200, %s214
      %p216 = scmp.eq.s32.totalorder %s31, 0
      %p217 = por %p215, %p216
      %s219 = sadd.s32 %s218, 1
      %p222 = scmp.eq.s32.totalorder %s25, 1
      %p223 = scmp.ne.s32.totalorder %s218, %s220
      %p224 = scmp.eq.s32.totalorder %s25, 0
      %p225 = por %p223, %p224
      %p226 = scmp.ne.s32.totalorder %s218, %s220
      %p227 = scmp.eq.s32.totalorder %s30, 1
      %p228 = por %p226, %p227
      %p229 = scmp.ne.s32.totalorder %s220, %s221
      %p230 = scmp.eq.s32.totalorder %s30, 0
      %p231 = por %p229, %p230
      %p232 = scmp.ne.s32.totalorder %s220, %s221
      %p233 = scmp.eq.s32.totalorder %s31, 1
      %p234 = por %p232, %p233
      %p236 = scmp.ne.s32.totalorder %s221, %s235
      %p237 = scmp.eq.s32.totalorder %s31, 0
      %p238 = por %p236, %p237
      %s240 = sadd.s32 %s239, 1
      %p243 = scmp.eq.s32.totalorder %s25, 1
      %p244 = scmp.ne.s32.totalorder %s239, %s241
      %p245 = scmp.eq.s32.totalorder %s25, 0
      %p246 = por %p244, %p245
      %p247 = scmp.ne.s32.totalorder %s239, %s241
      %p248 = scmp.eq.s32.totalorder %s30, 1
      %p249 = por %p247, %p248
      %p250 = scmp.ne.s32.totalorder %s241, %s242
      %p251 = scmp.eq.s32.totalorder %s30, 0
      %p252 = por %p250, %p251
      %p253 = scmp.ne.s32.totalorder %s241, %s242
      %p254 = scmp.eq.s32.totalorder %s31, 1
      %p255 = por %p253, %p254
      %p257 = scmp.ne.s32.totalorder %s242, %s256
      %p258 = scmp.eq.s32.totalorder %s31, 0
      %p259 = por %p257, %p258
      %s261 = sadd.s32 %s260, 1
      %p264 = scmp.eq.s32.totalorder %s25, 1
      %p265 = scmp.ne.s32.totalorder %s260, %s262
      %p266 = scmp.eq.s32.totalorder %s25, 0
      %p267 = por %p265, %p266
      %p268 = scmp.ne.s32.totalorder %s260, %s262
      %p269 = scmp.eq.s32.totalorder %s30, 1
      %p270 = por %p268, %p269
      %p271 = scmp.ne.s32.totalorder %s262, %s263
      %p272 = scmp.eq.s32.totalorder %s30, 0
      %p273 = por %p271, %p272
      %p274 = scmp.ne.s32.totalorder %s262, %s263
      %p275 = scmp.eq.s32.totalorder %s31, 1
      %p276 = por %p274, %p275
      %p278 = scmp.ne.s32.totalorder %s263, %s277
      %p279 = scmp.eq.s32.totalorder %s31, 0
      %p280 = por %p278, %p279
      %s282 = sadd.s32 %s281, 1
      %p285 = scmp.eq.s32.totalorder %s25, 1
      %p286 = scmp.ne.s32.totalorder %s281, %s283
      %p287 = scmp.eq.s32.totalorder %s25, 0
      %p288 = por %p286, %p287
      %p289 = scmp.ne.s32.totalorder %s281, %s283
      %p290 = scmp.eq.s32.totalorder %s30, 1
      %p291 = por %p289, %p290
      %p292 = scmp.ne.s32.totalorder %s283, %s284
      %p293 = scmp.eq.s32.totalorder %s30, 0
      %p294 = por %p292, %p293
      %p295 = scmp.ne.s32.totalorder %s283, %s284
      %p296 = scmp.eq.s32.totalorder %s31, 1
      %p297 = por %p295, %p296
      %p299 = scmp.ne.s32.totalorder %s284, %s298
      %p300 = scmp.eq.s32.totalorder %s31, 0
      %p301 = por %p299, %p300
      %s303 = sadd.s32 %s302, 1
      %p306 = scmp.eq.s32.totalorder %s25, 1
      %p307 = scmp.ne.s32.totalorder %s302, %s304
      %p308 = scmp.eq.s32.totalorder %s25, 0
      %p309 = por %p307, %p308
      %p310 = scmp.ne.s32.totalorder %s302, %s304
      %p311 = scmp.eq.s32.totalorder %s30, 1
      %p312 = por %p310, %p311
      %p313 = scmp.ne.s32.totalorder %s304, %s305
      %p314 = scmp.eq.s32.totalorder %s30, 0
      %p315 = por %p313, %p314
      %p316 = scmp.ne.s32.totalorder %s304, %s305
      %p317 = scmp.eq.s32.totalorder %s31, 1
      %p318 = por %p316, %p317
      %p320 = scmp.ne.s32.totalorder %s305, %s319
      %p321 = scmp.eq.s32.totalorder %s31, 0
      %p322 = por %p320, %p321
      %s323 = ssub.s32 %s32, %s44
      %s324 = ssub.s32 %s33, %s40
      %s325 = sor.u32 %s323, %s324
      %p326 = scmp.eq.s32.totalorder %s325, 0
      %s328 = sadd.s32 %s327, 1
      %s329 = scalar_select %p326, %s327, %s328
      %p332 = pneg %p326
      %p333 = scmp.eq.s32.totalorder %s25, 1
      %p334 = por %p332, %p333
      %p335 = scmp.ne.s32.totalorder %s327, %s330
      %p336 = scmp.eq.s32.totalorder %s25, 0
      %p337 = por %p335, %p336
      %p338 = scmp.ne.s32.totalorder %s327, %s330
      %p339 = scmp.eq.s32.totalorder %s30, 1
      %p340 = por %p338, %p339
      %p341 = scmp.ne.s32.totalorder %s330, %s331
      %p342 = scmp.eq.s32.totalorder %s30, 0
      %p343 = por %p341, %p342
      %p344 = scmp.ne.s32.totalorder %s330, %s331
      %p345 = scmp.eq.s32.totalorder %s31, 1
      %p346 = por %p344, %p345
      %p348 = scmp.ne.s32.totalorder %s331, %s347
      %p349 = scmp.eq.s32.totalorder %s31, 0
      %p350 = por %p348, %p349
      %p351 = scmp.le.s32.totalorder 1, %s25
      %p352 = scmp.lt.s32.totalorder %s25, 3
      %p353 = pnand %p351, %p352
      %p354 = pneg %p353
      // Predicated region
      $region9: #{tpu_custom_call.1} parent=5 // pred_check
        _
      $region10: #{tpu_custom_call.1} parent=5 // pred_check_branch
        %356 = sbr.rel (%p353) target = $region12
      $region11: #{tpu_custom_call.1} parent=5 // pred_region
        %s357 = ssub.s32 %s25, 1
        // Predicated region
        $region13: #{tpu_custom_call.1} parent=11 // pred_check
          %p358 = pneg %p84
        $region14: #{tpu_custom_call.1} parent=11 // pred_check_branch
          %360 = sbr.rel (%p358) target = $region16
        $region15: #{tpu_custom_call.1} parent=11 // pred_region
          %362 = vsyncadd [#allocation8], 0
          %s364 = sshll.u32 %s1, 4
          %s365 = int_to_ptr.hbm [resolvable:$true] %s364
          %s366 = sshll.u32 [#allocation7], 4
          %s367 = int_to_ptr.vmem [resolvable:$true] %s366
          %369 = dma.hbm_to_vmem [thread:$0]  %s365, 16, %s367, [#allocation8]
        $region16: #{tpu_custom_call.1} parent=11 // pred_fallthru
          _
        // Predicated region
        $region17: #{tpu_custom_call.1} parent=11 // pred_check
          %p370 = pneg %p105
        $region18: #{tpu_custom_call.1} parent=11 // pred_check_branch
          %372 = sbr.rel (%p370) target = $region20
        $region19: #{tpu_custom_call.1} parent=11 // pred_region
          %374 = vsyncadd [#allocation11], 0
          %s376 = sshll.u32 %s2, 4
          %s377 = int_to_ptr.hbm [resolvable:$true] %s376
          %s378 = sshll.u32 [#allocation10], 4
          %s379 = int_to_ptr.vmem [resolvable:$true] %s378
          %381 = dma.hbm_to_vmem [thread:$0]  %s377, 16, %s379, [#allocation11]
        $region20: #{tpu_custom_call.1} parent=11 // pred_fallthru
          _
        // Predicated region
        $region21: #{tpu_custom_call.1} parent=11 // pred_check
          %p382 = pneg %p126
        $region22: #{tpu_custom_call.1} parent=11 // pred_check_branch
          %384 = sbr.rel (%p382) target = $region24
        $region23: #{tpu_custom_call.1} parent=11 // pred_region
          _
        $region24: #{tpu_custom_call.1} parent=11 // pred_fallthru
          _
        // Predicated region
        $region25: #{tpu_custom_call.1} parent=11 // pred_check
          %p385 = pneg %p147
        $region26: #{tpu_custom_call.1} parent=11 // pred_check_branch
          %387 = sbr.rel (%p385) target = $region28
        $region27: #{tpu_custom_call.1} parent=11 // pred_region
          _
        $region28: #{tpu_custom_call.1} parent=11 // pred_fallthru
          _
        // Predicated region
        $region29: #{tpu_custom_call.1} parent=11 // pred_check
          %p388 = pneg %p168
        $region30: #{tpu_custom_call.1} parent=11 // pred_check_branch
          %390 = sbr.rel (%p388) target = $region32
        $region31: #{tpu_custom_call.1} parent=11 // pred_region
          %392 = vsyncadd [#allocation11], 0
          %s393 = sshll.u32 %s5, 4
          %s394 = int_to_ptr.hbm [resolvable:$true] %s393
          %s395 = sshll.u32 [#allocation12], 4
          %s396 = int_to_ptr.vmem [resolvable:$true] %s395
          %401 = dma.hbm_to_vmem [thread:$0]  %s394, 768, %s396, [#allocation11], 128, 128, 8
        $region32: #{tpu_custom_call.1} parent=11 // pred_fallthru
          _
        // Predicated region
        $region33: #{tpu_custom_call.1} parent=11 // pred_check
          %p402 = pneg %p189
        $region34: #{tpu_custom_call.1} parent=11 // pred_check_branch
          %404 = sbr.rel (%p402) target = $region36
        $region35: #{tpu_custom_call.1} parent=11 // pred_region
          _
        $region36: #{tpu_custom_call.1} parent=11 // pred_fallthru
          _
        // Predicated region
        $region37: #{tpu_custom_call.1} parent=11 // pred_check
          %p405 = pneg %p210
        $region38: #{tpu_custom_call.1} parent=11 // pred_check_branch
          %407 = sbr.rel (%p405) target = $region40
        $region39: #{tpu_custom_call.1} parent=11 // pred_region
          _
        $region40: #{tpu_custom_call.1} parent=11 // pred_fallthru
          _
        // Predicated region
        $region41: #{tpu_custom_call.1} parent=11 // pred_check
          %p408 = pneg %p231
        $region42: #{tpu_custom_call.1} parent=11 // pred_check_branch
          %410 = sbr.rel (%p408) target = $region44
        $region43: #{tpu_custom_call.1} parent=11 // pred_region
          _
        $region44: #{tpu_custom_call.1} parent=11 // pred_fallthru
          _
        // Predicated region
        $region45: #{tpu_custom_call.1} parent=11 // pred_check
          %p411 = pneg %p252
        $region46: #{tpu_custom_call.1} parent=11 // pred_check_branch
          %413 = sbr.rel (%p411) target = $region48
        $region47: #{tpu_custom_call.1} parent=11 // pred_region
          %415 = vsyncadd [#allocation14], 0
          %s416 = sshll.u32 %s9, 4
          %s417 = int_to_ptr.hbm [resolvable:$true] %s416
          %s418 = sshll.u32 [#allocation13], 4
          %s419 = int_to_ptr.vmem [resolvable:$true] %s418
          %424 = dma.hbm_to_vmem [thread:$0]  %s417, 768, %s419, [#allocation14], 128, 128, 8
        $region48: #{tpu_custom_call.1} parent=11 // pred_fallthru
          _
        // Predicated region
        $region49: #{tpu_custom_call.1} parent=11 // pred_check
          %p425 = pneg %p273
        $region50: #{tpu_custom_call.1} parent=11 // pred_check_branch
          %427 = sbr.rel (%p425) target = $region52
        $region51: #{tpu_custom_call.1} parent=11 // pred_region
          _
        $region52: #{tpu_custom_call.1} parent=11 // pred_fallthru
          _
        // Predicated region
        $region53: #{tpu_custom_call.1} parent=11 // pred_check
          %p428 = pneg %p294
        $region54: #{tpu_custom_call.1} parent=11 // pred_check_branch
          %430 = sbr.rel (%p428) target = $region56
        $region55: #{tpu_custom_call.1} parent=11 // pred_region
          _
        $region56: #{tpu_custom_call.1} parent=11 // pred_fallthru
          _
        // Predicated region
        $region57: #{tpu_custom_call.1} parent=11 // pred_check
          %p431 = pneg %p315
        $region58: #{tpu_custom_call.1} parent=11 // pred_check_branch
          %433 = sbr.rel (%p431) target = $region60
        $region59: #{tpu_custom_call.1} parent=11 // pred_region
          _
        $region60: #{tpu_custom_call.1} parent=11 // pred_fallthru
          _
      $region12: #{tpu_custom_call.1} parent=5 // pred_fallthru
        _
      %p434 = scmp.lt.s32.totalorder %s25, 2
      // Predicated region
      $region61: #{tpu_custom_call.1} parent=5 // pred_check
        %p435 = pneg %p434
      $region62: #{tpu_custom_call.1} parent=5 // pred_check_branch
        %437 = sbr.rel (%p435) target = $region64
      $region63: #{tpu_custom_call.1} parent=5 // pred_region
        // Predicated region
        $region65: #{tpu_custom_call.1} parent=63 // pred_check
          %p438 = pneg %p57
        $region66: #{tpu_custom_call.1} parent=63 // pred_check_branch
          %440 = sbr.rel (%p438) target = $region68
        $region67: #{tpu_custom_call.1} parent=63 // pred_region
          %p441 = scmp.lt.s32.totalorder %s32, 1
          %s442 = scalar_select %p441, %s32, 1
          %s443 = smul.addr %s442, 8
          %s444 = scalar_lea.vmem %s0, %s443
        $region68: #{tpu_custom_call.1} parent=63 // pred_fallthru
          _
      $region64: #{tpu_custom_call.1} parent=5 // pred_fallthru
        _
      %p445 = scmp.le.s32.totalorder 1, %s25
      %p446 = scmp.lt.s32.totalorder %s25, 3
      %p447 = pnand %p445, %p446
      %p448 = pneg %p447
      // Predicated region
      $region69: #{tpu_custom_call.1} parent=5 // pred_check
        _
      $region70: #{tpu_custom_call.1} parent=5 // pred_check_branch
        %450 = sbr.rel (%p447) target = $region72
      $region71: #{tpu_custom_call.1} parent=5 // pred_region
        %s451 = ssub.s32 %s25, 1
        // Predicated region
        $region73: #{tpu_custom_call.1} parent=71 // pred_check
          %p452 = pneg %p84
        $region74: #{tpu_custom_call.1} parent=71 // pred_check_branch
          %454 = sbr.rel (%p452) target = $region76
        $region75: #{tpu_custom_call.1} parent=71 // pred_region
          %456 = dma.done [#allocation8], 16
        $region76: #{tpu_custom_call.1} parent=71 // pred_fallthru
          _
        // Predicated region
        $region77: #{tpu_custom_call.1} parent=71 // pred_check
          %p457 = pneg %p105
        $region78: #{tpu_custom_call.1} parent=71 // pred_check_branch
          %459 = sbr.rel (%p457) target = $region80
        $region79: #{tpu_custom_call.1} parent=71 // pred_region
          %461 = dma.done [#allocation11], 16
        $region80: #{tpu_custom_call.1} parent=71 // pred_fallthru
          _
        // Predicated region
        $region81: #{tpu_custom_call.1} parent=71 // pred_check
          %p462 = pneg %p168
        $region82: #{tpu_custom_call.1} parent=71 // pred_check_branch
          %464 = sbr.rel (%p462) target = $region84
        $region83: #{tpu_custom_call.1} parent=71 // pred_region
          %466 = dma.done [#allocation11], 768
        $region84: #{tpu_custom_call.1} parent=71 // pred_fallthru
          _
        // Predicated region
        $region85: #{tpu_custom_call.1} parent=71 // pred_check
          %p467 = pneg %p252
        $region86: #{tpu_custom_call.1} parent=71 // pred_check_branch
          %469 = sbr.rel (%p467) target = $region88
        $region87: #{tpu_custom_call.1} parent=71 // pred_region
          %471 = dma.done [#allocation14], 768
        $region88: #{tpu_custom_call.1} parent=71 // pred_fallthru
          _
        %p472 = scmp.lt.s32.totalorder %s34, 1
        %s473 = scalar_select %p472, %s34, 1
        %s474 = smul.addr %s473, 8
        %s475 = scalar_lea.vmem %s0, %s474
        %p476 = pneg %p63
        %p477 = pneg %p60
        %p478 = pneg %p84
        %p479 = pneg %p81
        %p480 = pneg %p105
        %p481 = pneg %p102
        %p482 = pneg %p126
        %p483 = pneg %p123
        %p484 = pneg %p147
        %p485 = pneg %p144
        %p486 = pneg %p168
        %p487 = pneg %p165
        %p488 = pneg %p189
        %p489 = pneg %p186
        %p490 = pneg %p210
        %p491 = pneg %p207
        %p492 = pneg %p231
        %p493 = pneg %p228
        %p494 = pneg %p252
        %p495 = pneg %p249
        %p496 = pneg %p273
        %p497 = pneg %p270
        %p498 = pneg %p294
        %p499 = pneg %p291
        %p500 = pneg %p315
        %p501 = pneg %p312
        %p502 = pneg %p343
        %p503 = pneg %p340
        %s504 = sand.u32 %s330, 1
        %s505 = scalar_lea.sflag [#allocation9], %s504
        %s506 = sand.u32 %s330, 1
        %s507 = smul.addr %s506, 8
        %s508 = scalar_lea.vmem [#allocation15], %s507
        %p509 = scmp.lt.s32.totalorder %s34, 1
        %s510 = scalar_select %p509, %s34, 1
        %s511 = smul.addr %s510, 8
        %s512 = scalar_lea.vmem %s0, %s511
        %p513 = scmp.eq.s32.totalorder %s35, 0
        // Predicated region
        $region89: #{tpu_custom_call.1} parent=71 // pred_check
          %p514 = pneg %p513
        $region90: #{tpu_custom_call.1} parent=71 // pred_check_branch
          %516 = sbr.rel (%p514) target = $region92
        $region91: #{tpu_custom_call.1} parent=71 // pred_region
          %v517 = vld [vmem:[%s512] sm:$0xff]
          %v518 = vld [vmem:[#allocation7] sm:$0x1]
          %v519 = vld [vmem:[#allocation10] sm:$0x1]
          %vm520 = vcmask 392192
          %v521 = vsel %vm520, %v517, 0.0
          %522 = vadd.xlane.f32.xlu0 %v521
          %v523 = vpop.xlane.xlu0 %522
          %v524 = vrcp.pop 48.0
          %v525 = vmul.f32 48.0, %v524
          %v526 = vsub.f32 1.0, %v525
          %v527 = vmul.f32 %v524, %v526
          %v528 = vadd.f32 %v524, %v527
          %vm529 = vweird.f32 %v524
          %v530 = vsel %vm529, %v524, %v528
          %v531 = vmul.f32 %v523, %v530
          %v532 = vsub.f32 %v517, %v531
          %v533 = vmul.f32 %v532, %v532
          %v534 = vsel %vm520, %v533, 0.0
          %535 = vadd.xlane.f32.xlu0 %v534
          %v536 = vpop.xlane.xlu0 %535
          %v537 = vmul.f32 %v536, %v530
          %v538 = vadd.f32 %v537, 1e-05
          %v539 = vrsqrt.pop %v538
          %v540 = vmul.f32 %v539, %v538
          %v541 = vmul.f32 %v540, %v539
          %v542 = vmul.f32 0.5, %v541
          %v543 = vsub.f32 1.5, %v542
          %v544 = vmul.f32 %v539, %v543
          %vm545 = vweird.f32 %v538
          %vm546 = vweird.f32 %v539
          %vm547 = vmor %vm545, %vm546
          %v548 = vsel %vm547, %v539, %v544
          %v549 = vmul.f32 %v532, %v548
          %v551 = vperm.slane %v518, 0
          %v553 = vmul.f32 %v549, %v551
          %v555 = vperm.slane %v519, 0
          %v557 = vadd.f32 %v553, %v555
          %v558 = vld [vmem:[%s3] sm:$0xff]
          %v559 = vld [vmem:[%s3 + $0x8] sm:$0xff]
          %v560 = vld [vmem:[%s3 + $0x10] sm:$0xff]
          %v561 = vld [vmem:[%s3 + $0x18] sm:$0xff]
          %v562 = vld [vmem:[%s3 + $0x20] sm:$0xff]
          %v563 = vld [vmem:[%s3 + $0x28] sm:$0xff]
          %v564 = vld [vmem:[%s3 + $0x30] sm:$0xff]
          %v565 = vld [vmem:[%s3 + $0x38] sm:$0xff]
          %v566 = vld [vmem:[%s3 + $0x40] sm:$0xff]
          %v567 = vld [vmem:[%s3 + $0x48] sm:$0xff]
          %v568 = vld [vmem:[%s3 + $0x50] sm:$0xff]
          %v569 = vld [vmem:[%s3 + $0x58] sm:$0xff]
          %v570 = vld [vmem:[%s4] sm:$0x3]
          %v572 = vperm.slane %v570, 0
          %v573 = vperm.slane %v570, 1
          %v577 = vsel %vm520, %v557, 0
          %579 = vmatpush.msra.mxu0 0.0
          %580 = vmatpush.msra.mxu0 0.0
          %581 = vmatpush.msra.mxu0 0.0
          %582 = vmatpush.msra.mxu0 0.0
          %583 = vmatpush.msra.mxu0 0.0
          %584 = vmatpush.msra.mxu0 0.0
          %585 = vmatpush.msra.mxu0 0.0
          %586 = vmatpush.msra.mxu0 0.0
          %587 = vmatpush.msra.mxu0 0.0
          %588 = vmatpush.msra.mxu0 0.0
          %589 = vmatpush.msra.mxu0 %v568
          %590 = vmatpush.msra.mxu0 %v566
          %591 = vmatpush.msra.mxu0 %v564
          %592 = vmatpush.msra.mxu0 %v562
          %593 = vmatpush.msra.mxu0 %v560
          %594 = vmatpush.msra.mxu0 %v558
          %595 = vmatmul.f32.gmra.mxu0 %v577
          %v596 = vpop.f32.mrf.mxu0
          %v597 = vadd.f32 %v572, %v596
          %598 = vdwg.mxu0
          %599 = vmatpush.msra.mxu0 0.0
          %600 = vmatpush.msra.mxu0 0.0
          %601 = vmatpush.msra.mxu0 0.0
          %602 = vmatpush.msra.mxu0 0.0
          %603 = vmatpush.msra.mxu0 0.0
          %604 = vmatpush.msra.mxu0 0.0
          %605 = vmatpush.msra.mxu0 0.0
          %606 = vmatpush.msra.mxu0 0.0
          %607 = vmatpush.msra.mxu0 0.0
          %608 = vmatpush.msra.mxu0 0.0
          %609 = vmatpush.msra.mxu0 %v569
          %610 = vmatpush.msra.mxu0 %v567
          %611 = vmatpush.msra.mxu0 %v565
          %612 = vmatpush.msra.mxu0 %v563
          %613 = vmatpush.msra.mxu0 %v561
          %614 = vmatpush.msra.mxu0 %v559
          %615 = vmatmul.f32.gmra.mxu0 %v577
          %v616 = vpop.f32.mrf.mxu0
          %v617 = vadd.f32 %v573, %v616
          %618 = vdwg.mxu0
          %v619 = vmul.f32 %v597, 0.25
          %620 = vst.msk [vmem:[#allocation2] sm:$0xff] %vm520, %v619
          %622 = vrot.lane.b32.xlu0 %v597, 80
          %v623 = vpop.permute.xlu0 %622
          %625 = vxpose.xlu0.b32.start [1/16] %v623, 128
          %626 = vxpose.xlu0.b32.cont [2/16] 0.0, 128
          %627 = vxpose.xlu0.b32.cont [3/16] 0.0, 128
          %628 = vxpose.xlu0.b32.cont [4/16] 0.0, 128
          %629 = vxpose.xlu0.b32.cont [5/16] 0.0, 128
          %630 = vxpose.xlu0.b32.cont [6/16] 0.0, 128
          %631 = vxpose.xlu0.b32.cont [7/16] 0.0, 128
          %632 = vxpose.xlu0.b32.cont [8/16] 0.0, 128
          %633 = vxpose.xlu0.b32.cont [9/16] 0.0, 128
          %634 = vxpose.xlu0.b32.cont [10/16] 0.0, 128
          %635 = vxpose.xlu0.b32.cont [11/16] 0.0, 128
          %636 = vxpose.xlu0.b32.cont [12/16] 0.0, 128
          %637 = vxpose.xlu0.b32.cont [13/16] 0.0, 128
          %638 = vxpose.xlu0.b32.cont [14/16] 0.0, 128
          %639 = vxpose.xlu0.b32.cont [15/16] 0.0, 128
          %640 = vxpose.xlu0.b32.end [16/16] 0.0, 128
          %v641 = vpop.trf.xlu0
          %v642 = vpop.trf.xlu0
          %v643 = vpop.trf.xlu0
          %v644 = vpop.trf.xlu0
          %v645 = vpop.trf.xlu0
          %v646 = vpop.trf.xlu0
          %v647 = vpop.trf.xlu0
          %v648 = vpop.trf.xlu0
          %v649 = vpop.trf.xlu0
          %v650 = vpop.trf.xlu0
          %v651 = vpop.trf.xlu0
          %v652 = vpop.trf.xlu0
          %v653 = vpop.trf.xlu0
          %v654 = vpop.trf.xlu0
          %v655 = vpop.trf.xlu0
          %v656 = vpop.trf.xlu0
          %vm657 = vcmask 64512
          %658 = vst.msk [vmem:[#allocation3] sm:$0xff] %vm657, %v641
          %659 = vst.msk [vmem:[#allocation3 + $0x8] sm:$0xff] %vm657, %v642
          %660 = vst.msk [vmem:[#allocation3 + $0x10] sm:$0xff] %vm657, %v643
          %661 = vst.msk [vmem:[#allocation3 + $0x18] sm:$0xff] %vm657, %v644
          %662 = vst.msk [vmem:[#allocation3 + $0x20] sm:$0xff] %vm657, %v645
          %663 = vst.msk [vmem:[#allocation3 + $0x28] sm:$0xff] %vm657, %v646
          %665 = vrot.lane.b32.xlu0 %v597, 32
          %v666 = vpop.permute.xlu0 %665
          %667 = vrot.lane.b32.xlu0 %v617, 32
          %v668 = vpop.permute.xlu0 %667
          %vm669 = vcmask 261120
          %v670 = vsel %vm669, %v666, %v668
          %672 = vst.msk [vmem:[#allocation4] sm:$0xff] %vm520, %v670
        $region92: #{tpu_custom_call.1} parent=71 // pred_fallthru
          _
        %s673 = smul.u32 %s35, 8
        %s674 = scalar_lea.vmem [#allocation2], %s673
        %v675 = vld [vmem:[%s674] sm:$0xff]
        %v676 = vld [vmem:[#allocation3] sm:$0xff]
        %v677 = vld [vmem:[#allocation3 + $0x8] sm:$0xff]
        %vm678 = vcmask 130048
        %v680 = vsel %vm678, %v675, 0
        %682 = vmatpush.msra.mxu0 0.0
        %683 = vmatpush.msra.mxu0 0.0
        %684 = vmatpush.msra.mxu0 0.0
        %685 = vmatpush.msra.mxu0 0.0
        %686 = vmatpush.msra.mxu0 0.0
        %687 = vmatpush.msra.mxu0 0.0
        %688 = vmatpush.msra.mxu0 0.0
        %689 = vmatpush.msra.mxu0 0.0
        %690 = vmatpush.msra.mxu0 0.0
        %691 = vmatpush.msra.mxu0 0.0
        %692 = vmatpush.msra.mxu0 0.0
        %693 = vmatpush.msra.mxu0 0.0
        %694 = vmatpush.msra.mxu0 0.0
        %695 = vmatpush.msra.mxu0 0.0
        %696 = vmatpush.msra.mxu0 %v677
        %697 = vmatpush.msra.mxu0 %v676
        %698 = vmatmul.f32.gmra.mxu0 %v680
        %v699 = vpop.f32.mrf.mxu0
        %v700 = vadd.f32 0.0, %v699
        %701 = vdwg.mxu0
        %vm702 = vcmask 64512
        %v703 = vsel %vm702, %v700, -inf
        %704 = vmax.xlane.f32.xlu0 %v703
        %v705 = vpop.xlane.xlu0 %704
        %v706 = vsub.f32 %v700, %v705
        %v707 = vmul.f32 %v706, 1.442695
        %v708 = vpow.pop %v707
        %v709 = vsel %vm702, %v708, 0.0
        %710 = vadd.xlane.f32.xlu0 %v709
        %v711 = vpop.xlane.xlu0 %710
        %v712 = vrcp.pop %v711
        %v713 = vmul.f32 %v708, %v712
        %v714 = vld [vmem:[#allocation4] sm:$0xff]
        %v716 = vsel %vm702, %v713, 0
        %718 = vmatpush.msra.mxu0 0.0
        %719 = vmatpush.msra.mxu0 0.0
        %720 = vmatpush.msra.mxu0 0.0
        %721 = vmatpush.msra.mxu0 0.0
        %722 = vmatpush.msra.mxu0 0.0
        %723 = vmatpush.msra.mxu0 0.0
        %724 = vmatpush.msra.mxu0 0.0
        %725 = vmatpush.msra.mxu0 0.0
        %726 = vmatpush.msra.mxu0 0.0
        %727 = vmatpush.msra.mxu0 0.0
        %728 = vmatpush.msra.mxu0 0.0
        %729 = vmatpush.msra.mxu0 0.0
        %730 = vmatpush.msra.mxu0 0.0
        %731 = vmatpush.msra.mxu0 0.0
        %732 = vmatpush.msra.mxu0 0.0
        %733 = vmatpush.msra.mxu0 %v714
        %734 = vmatmul.f32.gmra.mxu0 %v716
        %v735 = vpop.f32.mrf.mxu0
        %v736 = vadd.f32 0.0, %v735
        %737 = vdwg.mxu0
        %738 = vst.msk [vmem:[#allocation5] sm:$0xff] %vm678, %v736
        %v739 = vld [vmem:[%s674] sm:$0xff]
        %v740 = vld [vmem:[#allocation3 + $0x10] sm:$0xff]
        %v741 = vld [vmem:[#allocation3 + $0x18] sm:$0xff]
        %743 = vrot.lane.b32.xlu0 %v739, 112
        %v744 = vpop.permute.xlu0 %743
        %v745 = vsel %vm678, %v744, 0
        %747 = vmatpush.msra.mxu0 0.0
        %748 = vmatpush.msra.mxu0 0.0
        %749 = vmatpush.msra.mxu0 0.0
        %750 = vmatpush.msra.mxu0 0.0
        %751 = vmatpush.msra.mxu0 0.0
        %752 = vmatpush.msra.mxu0 0.0
        %753 = vmatpush.msra.mxu0 0.0
        %754 = vmatpush.msra.mxu0 0.0
        %755 = vmatpush.msra.mxu0 0.0
        %756 = vmatpush.msra.mxu0 0.0
        %757 = vmatpush.msra.mxu0 0.0
        %758 = vmatpush.msra.mxu0 0.0
        %759 = vmatpush.msra.mxu0 0.0
        %760 = vmatpush.msra.mxu0 0.0
        %761 = vmatpush.msra.mxu0 %v741
        %762 = vmatpush.msra.mxu0 %v740
        %763 = vmatmul.f32.gmra.mxu0 %v745
        %v764 = vpop.f32.mrf.mxu0
        %v765 = vadd.f32 0.0, %v764
        %766 = vdwg.mxu0
        %v767 = vsel %vm702, %v765, -inf
        %768 = vmax.xlane.f32.xlu0 %v767
        %v769 = vpop.xlane.xlu0 %768
        %v770 = vsub.f32 %v765, %v769
        %v771 = vmul.f32 %v770, 1.442695
        %v772 = vpow.pop %v771
        %v773 = vsel %vm702, %v772, 0.0
        %774 = vadd.xlane.f32.xlu0 %v773
        %v775 = vpop.xlane.xlu0 %774
        %v776 = vrcp.pop %v775
        %v777 = vmul.f32 %v772, %v776
        %v778 = vld [vmem:[#allocation4] sm:$0xff]
        %780 = vrot.lane.b32.xlu0 %v778, 112
        %v781 = vpop.permute.xlu0 %780
        %v784 = vsel %vm702, %v777, 0
        %786 = vmatpush.msra.mxu0 0.0
        %787 = vmatpush.msra.mxu0 0.0
        %788 = vmatpush.msra.mxu0 0.0
        %789 = vmatpush.msra.mxu0 0.0
        %790 = vmatpush.msra.mxu0 0.0
        %791 = vmatpush.msra.mxu0 0.0
        %792 = vmatpush.msra.mxu0 0.0
        %793 = vmatpush.msra.mxu0 0.0
        %794 = vmatpush.msra.mxu0 0.0
        %795 = vmatpush.msra.mxu0 0.0
        %796 = vmatpush.msra.mxu0 0.0
        %797 = vmatpush.msra.mxu0 0.0
        %798 = vmatpush.msra.mxu0 0.0
        %799 = vmatpush.msra.mxu0 0.0
        %800 = vmatpush.msra.mxu0 0.0
        %801 = vmatpush.msra.mxu0 %v781
        %802 = vmatmul.f32.gmra.mxu0 %v784
        %v803 = vpop.f32.mrf.mxu0
        %v804 = vadd.f32 0.0, %v803
        %805 = vdwg.mxu0
        %807 = vrot.lane.b32.xlu0 %v804, 16
        %v808 = vpop.permute.xlu0 %807
        %vm810 = vcmask 261248
        %811 = vst.msk [vmem:[#allocation5] sm:$0xff] %vm810, %v808
        %v812 = vld [vmem:[%s674] sm:$0xff]
        %v813 = vld [vmem:[#allocation3 + $0x20] sm:$0xff]
        %v814 = vld [vmem:[#allocation3 + $0x28] sm:$0xff]
        %816 = vrot.lane.b32.xlu0 %v812, 96
        %v817 = vpop.permute.xlu0 %816
        %v818 = vsel %vm678, %v817, 0
        %820 = vmatpush.msra.mxu0 0.0
        %821 = vmatpush.msra.mxu0 0.0
        %822 = vmatpush.msra.mxu0 0.0
        %823 = vmatpush.msra.mxu0 0.0
        %824 = vmatpush.msra.mxu0 0.0
        %825 = vmatpush.msra.mxu0 0.0
        %826 = vmatpush.msra.mxu0 0.0
        %827 = vmatpush.msra.mxu0 0.0
        %828 = vmatpush.msra.mxu0 0.0
        %829 = vmatpush.msra.mxu0 0.0
        %830 = vmatpush.msra.mxu0 0.0
        %831 = vmatpush.msra.mxu0 0.0
        %832 = vmatpush.msra.mxu0 0.0
        %833 = vmatpush.msra.mxu0 0.0
        %834 = vmatpush.msra.mxu0 %v814
        %835 = vmatpush.msra.mxu0 %v813
        %836 = vmatmul.f32.gmra.mxu0 %v818
        %v837 = vpop.f32.mrf.mxu0
        %v838 = vadd.f32 0.0, %v837
        %839 = vdwg.mxu0
        %v840 = vsel %vm702, %v838, -inf
        %841 = vmax.xlane.f32.xlu0 %v840
        %v842 = vpop.xlane.xlu0 %841
        %v843 = vsub.f32 %v838, %v842
        %v844 = vmul.f32 %v843, 1.442695
        %v845 = vpow.pop %v844
        %v846 = vsel %vm702, %v845, 0.0
        %847 = vadd.xlane.f32.xlu0 %v846
        %v848 = vpop.xlane.xlu0 %847
        %v849 = vrcp.pop %v848
        %v850 = vmul.f32 %v845, %v849
        %v851 = vld [vmem:[#allocation4] sm:$0xff]
        %853 = vrot.lane.b32.xlu0 %v851, 96
        %v854 = vpop.permute.xlu0 %853
        %v857 = vsel %vm702, %v850, 0
        %859 = vmatpush.msra.mxu0 0.0
        %860 = vmatpush.msra.mxu0 0.0
        %861 = vmatpush.msra.mxu0 0.0
        %862 = vmatpush.msra.mxu0 0.0
        %863 = vmatpush.msra.mxu0 0.0
        %864 = vmatpush.msra.mxu0 0.0
        %865 = vmatpush.msra.mxu0 0.0
        %866 = vmatpush.msra.mxu0 0.0
        %867 = vmatpush.msra.mxu0 0.0
        %868 = vmatpush.msra.mxu0 0.0
        %869 = vmatpush.msra.mxu0 0.0
        %870 = vmatpush.msra.mxu0 0.0
        %871 = vmatpush.msra.mxu0 0.0
        %872 = vmatpush.msra.mxu0 0.0
        %873 = vmatpush.msra.mxu0 0.0
        %874 = vmatpush.msra.mxu0 %v854
        %875 = vmatmul.f32.gmra.mxu0 %v857
        %v876 = vpop.f32.mrf.mxu0
        %v877 = vadd.f32 0.0, %v876
        %878 = vdwg.mxu0
        %880 = vrot.lane.b32.xlu0 %v877, 32
        %v881 = vpop.permute.xlu0 %880
        %vm883 = vcmask 392448
        %884 = vst.msk [vmem:[#allocation5] sm:$0xff] %vm883, %v881
        %s885 = scalar_lea.vmem %s512, %s673
        %v886 = vld [vmem:[%s885] sm:$0xff]
        %v887 = vld [vmem:[#allocation5] sm:$0xff]
        %v888 = vld [vmem:[#allocation12] sm:$0xff]
        %v889 = vld [vmem:[#allocation12 + $0x8] sm:$0xff]
        %v890 = vld [vmem:[#allocation12 + $0x10] sm:$0xff]
        %v891 = vld [vmem:[#allocation12 + $0x18] sm:$0xff]
        %v892 = vld [vmem:[#allocation12 + $0x20] sm:$0xff]
        %v893 = vld [vmem:[#allocation12 + $0x28] sm:$0xff]
        %v894 = vld [vmem:[%s6] sm:$0x1]
        %v896 = vperm.slane %v894, 0
        %vm898 = vcmask 392192
        %v900 = vsel %vm898, %v887, 0
        %902 = vmatpush.msra.mxu0 0.0
        %903 = vmatpush.msra.mxu0 0.0
        %904 = vmatpush.msra.mxu0 0.0
        %905 = vmatpush.msra.mxu0 0.0
        %906 = vmatpush.msra.mxu0 0.0
        %907 = vmatpush.msra.mxu0 0.0
        %908 = vmatpush.msra.mxu0 0.0
        %909 = vmatpush.msra.mxu0 0.0
        %910 = vmatpush.msra.mxu0 0.0
        %911 = vmatpush.msra.mxu0 0.0
        %912 = vmatpush.msra.mxu0 %v893
        %913 = vmatpush.msra.mxu0 %v892
        %914 = vmatpush.msra.mxu0 %v891
        %915 = vmatpush.msra.mxu0 %v890
        %916 = vmatpush.msra.mxu0 %v889
        %917 = vmatpush.msra.mxu0 %v888
        %918 = vmatmul.f32.gmra.mxu0 %v900
        %v919 = vpop.f32.mrf.mxu0
        %v920 = vadd.f32 %v896, %v919
        %921 = vdwg.mxu0
        %v922 = vadd.f32 %v920, %v886
        %v923 = vld [vmem:[%s7] sm:$0x1]
        %v924 = vld [vmem:[%s8] sm:$0x1]
        %v925 = vsel %vm898, %v922, 0.0
        %926 = vadd.xlane.f32.xlu0 %v925
        %v927 = vpop.xlane.xlu0 %926
        %v928 = vrcp.pop 48.0
        %v929 = vmul.f32 48.0, %v928
        %v930 = vsub.f32 1.0, %v929
        %v931 = vmul.f32 %v928, %v930
        %v932 = vadd.f32 %v928, %v931
        %vm933 = vweird.f32 %v928
        %v934 = vsel %vm933, %v928, %v932
        %v935 = vmul.f32 %v927, %v934
        %v936 = vsub.f32 %v922, %v935
        %v937 = vmul.f32 %v936, %v936
        %v938 = vsel %vm898, %v937, 0.0
        %939 = vadd.xlane.f32.xlu0 %v938
        %v940 = vpop.xlane.xlu0 %939
        %v941 = vmul.f32 %v940, %v934
        %v942 = vadd.f32 %v941, 1e-05
        %v943 = vrsqrt.pop %v942
        %v944 = vmul.f32 %v943, %v942
        %v945 = vmul.f32 %v944, %v943
        %v946 = vmul.f32 0.5, %v945
        %v947 = vsub.f32 1.5, %v946
        %v948 = vmul.f32 %v943, %v947
        %vm949 = vweird.f32 %v942
        %vm950 = vweird.f32 %v943
        %vm951 = vmor %vm949, %vm950
        %v952 = vsel %vm951, %v943, %v948
        %v953 = vmul.f32 %v936, %v952
        %v955 = vperm.slane %v923, 0
        %v957 = vmul.f32 %v953, %v955
        %v959 = vperm.slane %v924, 0
        %v961 = vadd.f32 %v957, %v959
        %962 = vst.msk [vmem:[#allocation5] sm:$0xff] %vm898, %v961
        %v963 = vld [vmem:[%s12] sm:$0x1]
        %v965 = vperm.slane %v963, 0
        %v967 = vadd.f32 %v922, %v965
        %968 = vst.msk [vmem:[#allocation6] sm:$0xff] %vm898, %v967
        %v969 = vld [vmem:[#allocation5] sm:$0xff]
        %v970 = vld [vmem:[#allocation13] sm:$0xff]
        %v971 = vld [vmem:[#allocation13 + $0x8] sm:$0xff]
        %v972 = vld [vmem:[#allocation13 + $0x10] sm:$0xff]
        %v973 = vld [vmem:[#allocation13 + $0x18] sm:$0xff]
        %v974 = vld [vmem:[#allocation13 + $0x20] sm:$0xff]
        %v975 = vld [vmem:[#allocation13 + $0x28] sm:$0xff]
        %v976 = vld [vmem:[%s10] sm:$0x1]
        %v978 = vperm.slane %v976, 0
        %v981 = vsel %vm898, %v969, 0
        %983 = vmatpush.msra.mxu0 0.0
        %984 = vmatpush.msra.mxu0 0.0
        %985 = vmatpush.msra.mxu0 0.0
        %986 = vmatpush.msra.mxu0 0.0
        %987 = vmatpush.msra.mxu0 0.0
        %988 = vmatpush.msra.mxu0 0.0
        %989 = vmatpush.msra.mxu0 0.0
        %990 = vmatpush.msra.mxu0 0.0
        %991 = vmatpush.msra.mxu0 0.0
        %992 = vmatpush.msra.mxu0 0.0
        %993 = vmatpush.msra.mxu0 %v975
        %994 = vmatpush.msra.mxu0 %v974
        %995 = vmatpush.msra.mxu0 %v973
        %996 = vmatpush.msra.mxu0 %v972
        %997 = vmatpush.msra.mxu0 %v971
        %998 = vmatpush.msra.mxu0 %v970
        %999 = vmatmul.f32.gmra.mxu0 %v981
        %v1000 = vpop.f32.mrf.mxu0
        %v1001 = vadd.f32 %v978, %v1000
        %1002 = vdwg.mxu0
        %v1003 = vmul.f32 %v1001, 0.5
        %v1004 = vmul.f32 %v1001, 0.70710677
        %vm1005 = vcmp.ge.f32.partialorder %v1004, 0.0
        %v1006 = vsel %vm1005, 1.0, -1.0
        %v1007 = vand.u32 2147483647, %v1004
        %v1008 = vmul.f32 %v1007, 0.3275911
        %v1009 = vadd.f32 %v1008, 1.0
        %v1010 = vrcp.pop %v1009
        %v1011 = vmul.f32 %v1010, 1.0614054
        %v1012 = vadd.f32 %v1011, -1.4531521
        %v1013 = vmul.f32 %v1012, %v1010
        %v1014 = vadd.f32 %v1013, 1.4214138
        %v1015 = vmul.f32 %v1014, %v1010
        %v1016 = vadd.f32 %v1015, -0.28449672
        %v1017 = vmul.f32 %v1016, %v1010
        %v1018 = vadd.f32 %v1017, 0.2548296
        %v1019 = vmul.f32 %v1018, %v1010
        %v1020 = vsub.f32 0.0, %v1007
        %v1021 = vmul.f32 %v1020, %v1007
        %v1022 = vmul.f32 %v1021, 1.442695
        %v1023 = vpow.pop %v1022
        %v1024 = vmul.f32 %v1019, %v1023
        %v1025 = vsub.f32 1.0, %v1024
        %v1026 = vmul.f32 %v1006, %v1025
        %v1027 = vadd.f32 %v1026, 1.0
        %v1028 = vmul.f32 %v1003, %v1027
        %v1029 = vld [vmem:[#allocation6] sm:$0xff]
        %v1030 = vld [vmem:[%s11] sm:$0xff]
        %v1031 = vld [vmem:[%s11 + $0x8] sm:$0xff]
        %v1032 = vld [vmem:[%s11 + $0x10] sm:$0xff]
        %v1033 = vld [vmem:[%s11 + $0x18] sm:$0xff]
        %v1034 = vld [vmem:[%s11 + $0x20] sm:$0xff]
        %v1035 = vld [vmem:[%s11 + $0x28] sm:$0xff]
        %v1036 = vld [vmem:[%s11 + $0x30] sm:$0xff]
        %v1037 = vld [vmem:[%s11 + $0x38] sm:$0xff]
        %vm1038 = vcmask 523264
        %v1040 = vsel %vm1038, %v1028, 0
        %1042 = vmatpush.msra.mxu0 0.0
        %1043 = vmatpush.msra.mxu0 0.0
        %1044 = vmatpush.msra.mxu0 0.0
        %1045 = vmatpush.msra.mxu0 0.0
        %1046 = vmatpush.msra.mxu0 0.0
        %1047 = vmatpush.msra.mxu0 0.0
        %1048 = vmatpush.msra.mxu0 0.0
        %1049 = vmatpush.msra.mxu0 0.0
        %1050 = vmatpush.msra.mxu0 %v1037
        %1051 = vmatpush.msra.mxu0 %v1036
        %1052 = vmatpush.msra.mxu0 %v1035
        %1053 = vmatpush.msra.mxu0 %v1034
        %1054 = vmatpush.msra.mxu0 %v1033
        %1055 = vmatpush.msra.mxu0 %v1032
        %1056 = vmatpush.msra.mxu0 %v1031
        %1057 = vmatpush.msra.mxu0 %v1030
        %1058 = vmatmul.f32.gmra.mxu0 %v1040
        %v1059 = vpop.f32.mrf.mxu0
        %v1060 = vadd.f32 0.0, %v1059
        %1061 = vdwg.mxu0
        %v1062 = vadd.f32 %v1029, %v1060
        %1063 = vst.msk [vmem:[#allocation6] sm:$0xff] %vm898, %v1062
        %v1064 = vld [vmem:[#allocation6] sm:$0xff]
        %1065 = vst.msk [vmem:[%s508] sm:$0xff] %vm898, %v1064
        %s1066 = sand.u32 %s330, 1
        %s1067 = scalar_lea.sflag [#allocation9], %s1066
        %s1068 = sand.u32 %s330, 1
        %s1069 = smul.addr %s1068, 8
        %s1070 = scalar_lea.vmem [#allocation15], %s1069
        // Predicated region
        $region93: #{tpu_custom_call.1} parent=71 // pred_check
          %p1071 = pneg %p340
        $region94: #{tpu_custom_call.1} parent=71 // pred_check_branch
          %1073 = sbr.rel (%p1071) target = $region96
        $region95: #{tpu_custom_call.1} parent=71 // pred_region
          %1075 = vsyncadd %s1067, 0
          %s1076 = sadd.s32 %s35, %s34
          %s1077 = smul.addr %s1076, 8
          %s1078 = scalar_lea.hbm %s13, %s1077
          %s1080 = sshll.u32 %s1070, 4
          %s1081 = int_to_ptr.vmem [resolvable:$true] %s1080
          %s1082 = sshll.u32 %s1078, 4
          %s1083 = int_to_ptr.hbm [resolvable:$true] %s1082
          %1085 = dma.vmem_to_hbm [thread:$0]  %s1081, 128, %s1083, %s1067
        $region96: #{tpu_custom_call.1} parent=71 // pred_fallthru
          _
      $region72: #{tpu_custom_call.1} parent=5 // pred_fallthru
        _
      %p1086 = scmp.le.s32.totalorder 2, %s25
      // Predicated region
      $region97: #{tpu_custom_call.1} parent=5 // pred_check
        %p1087 = pneg %p1086
      $region98: #{tpu_custom_call.1} parent=5 // pred_check_branch
        %1089 = sbr.rel (%p1087) target = $region100
      $region99: #{tpu_custom_call.1} parent=5 // pred_region
        %s1090 = ssub.s32 %s25, 2
        // Predicated region
        $region101: #{tpu_custom_call.1} parent=99 // pred_check
          %p1091 = pneg %p346
        $region102: #{tpu_custom_call.1} parent=99 // pred_check_branch
          %1093 = sbr.rel (%p1091) target = $region104
        $region103: #{tpu_custom_call.1} parent=99 // pred_region
          %s1094 = sand.u32 %s331, 1
          %s1095 = scalar_lea.sflag [#allocation9], %s1094
          %s1096 = sand.u32 %s331, 1
          %s1097 = smul.addr %s1096, 8
          %s1098 = scalar_lea.vmem [#allocation15], %s1097
          %1100 = dma.done %s1095, 128
        $region104: #{tpu_custom_call.1} parent=99 // pred_fallthru
          _
      $region100: #{tpu_custom_call.1} parent=5 // pred_fallthru
        _
    $region6: #{tpu_custom_call.1} parent=1 // loop_footer
      %s29 = sadd.s32 1, %s25
    $region7: #{tpu_custom_call.1} parent=1 // loop_footer_branch
      %24 = sbr.rel target = $region3
    $region8: #{tpu_custom_call.1} parent=1 // loop_exit
      _
    %1101 = vsyncpa [#allocation8], 1
    %s1102 = scalar_lea.sflag [#allocation8], 1
    %1103 = vsyncpa %s1102, 1
    %1104 = vsyncpa [#allocation11], 1
    %1105 = vsyncpa [#allocation14], 1
    %1106 = vsyncpa [#allocation9], 1
    %s1107 = scalar_lea.sflag [#allocation9], 1
    %1108 = vsyncpa %s1107, 1

</llo_original>
